<compile_context>
chip_gen: v5e
topology: v5e:2x2
jax: 0.10.0
libtpu: 0.0.40
codegen_flags: <defaults>
</compile_context>

<pallas_src>
import functools

import jax
import jax.numpy as jnp
from jax.experimental import pallas as pl
from jax.experimental.pallas import tpu as pltpu


def _dot_t(v, w):
    """y = v @ w.T with w in PyTorch [out, in] layout, contracting the
    weight's `in` dim directly (no materialized transpose)."""
    return jax.lax.dot_general(
        v, w,
        dimension_numbers=(((1,), (1,)), ((), ())),
        precision=jax.lax.Precision.HIGHEST,
        preferred_element_type=jnp.float32,
    )


def _koopman_loss_kernel(x_ref, u_ref, wen_ref, wde_ref, wkz_ref, wku_ref,
                         out_ref, *, P, B, a1, a2, a3, a4, a5, a6):
    # Weights are tiny -> load once.
    wen = wen_ref[...]          # [L, n]   en: n -> L
    wde = wde_ref[...]          # [n, L]   de: L -> n
    wkz = wkz_ref[...]          # [L, L]   K's latent block (pre-split)
    wku = wku_ref[...]          # [L, m]   K's control block (pre-split)

    x_all = x_ref[...]          # [(P+1)*B, n], time-major (step t = rows t*B..)
    u_all = u_ref[...]          # [P*B, m],     time-major

    # ---- Loop-independent batched matmuls (off the recurrent chain) --------
    en_x_all = _dot_t(x_all, wen)        # en(x)      for all P+1 steps  [(P+1)B, L]
    de_en_x_all = _dot_t(en_x_all, wde)  # de(en(x))  for all P+1 steps  [(P+1)B, n]
    u_proj = _dot_t(u_all, wku)          # control part of K, all P steps [P*B, L]

    # ---- Recurrence: only z @ Wk_z.T remains on the serial chain -----------
    # K(cat(z, u)) == z @ Wk_z.T + u @ Wk_u.T  (split + control term hoisted)
    # P is small -> full static unroll.  For large P switch to lax.fori_loop
    # writing z into a VMEM scratch to bound live ranges.
    zs = []
    z = en_x_all[0:B, :]                         # z0 = en(x[:, 0, :])
    for i in range(P):
        z = _dot_t(z, wkz) + u_proj[i * B:(i + 1) * B, :]
        zs.append(z)
    z_stack = jnp.concatenate(zs, axis=0)        # [P*B, L], time-major

    # ---- Deferred decode + batched loss math --------------------------------
    pred_all = _dot_t(z_stack, wde)              # de(z_i) for all steps  [P*B, n]

    x_next = x_all[B:, :]                        # x[:, 1:, :]       [P*B, n]
    en_x_next = en_x_all[B:, :]                  # en(x)[:, 1:, :]   [P*B, L]
    de_en_x_next = de_en_x_all[B:, :]            # de(en(x))[:, 1:]  [P*B, n]

    d_pred = x_next - pred_all
    d_lat = en_x_next - z_stack
    d_rec = x_next - de_en_x_next

    # sum-reduction MSE terms: one reduction each over the whole slab
    # (equals the sum of the per-step sums).
    l_xx = jnp.sum(d_pred * d_pred, keepdims=True)   # (1, 1)
    l_xo = jnp.sum(d_lat * d_lat, keepdims=True)
    l_ox = jnp.sum(d_rec * d_rec, keepdims=True)

    # inf-norm terms: per-step max over the (B, n) block, summed over P.
    abs_pred = jnp.abs(d_pred)
    abs_rec = jnp.abs(d_rec)
    l_oo = jnp.zeros((1, 1), jnp.float32)
    for i in range(P):
        sl = slice(i * B, (i + 1) * B)
        l_oo = l_oo + (jnp.max(abs_pred[sl, :], keepdims=True)
                       + jnp.max(abs_rec[sl, :], keepdims=True))

    inv_p = 1.0 / P
    # TODO(synk): en/de are assumed single bias-free linear layers
    # (linear_system); a deeper MLP encoder/decoder would add its layers,
    # activations and extra L2 terms here.
    l2_en = jnp.sum(wen * wen, keepdims=True)
    l2_de = jnp.sum(wde * wde, keepdims=True)

    loss = (a1 * inv_p * l_ox + a2 * inv_p * l_xx + a3 * inv_p * l_xo
            + a4 * inv_p * l_oo + a5 * l2_en + a6 * l2_de)
    out_ref[...] = loss.astype(out_ref.dtype)


class PallasKoopmanLoss:
    """Pallas port of Loss(a1..a6, P).forward(model, x, u) where model's
    children (en, de, K) are bias-free linear layers."""

    def __init__(self, a1, a2, a3, a4, a5, a6, P):
        self.a = (float(a1), float(a2), float(a3),
                  float(a4), float(a5), float(a6))
        self.P = int(P)

    def __call__(self, x, u, w_en, w_de, w_k):
        B, p_plus_1, n = x.shape
        _, P, m = u.shape
        L, n_w = w_en.shape
        assert p_plus_1 == self.P + 1 and P == self.P and n_w == n
        assert w_de.shape == (n, L) and w_k.shape == (L, L + m)
        a1, a2, a3, a4, a5, a6 = self.a

        # Time-major, pre-flattened inputs: step t occupies the B contiguous
        # (sublane-aligned) rows [t*B, (t+1)*B).
        x_tm = jnp.transpose(x, (1, 0, 2)).reshape((self.P + 1) * B, n)
        u_tm = jnp.transpose(u, (1, 0, 2)).reshape(self.P * B, m)
        # Pre-split K's weight so each operand is lane-aligned at offset 0.
        wk_z = w_k[:, :L]            # [L, L]
        wk_u = w_k[:, L:]            # [L, m]

        flops = 2 * B * ((self.P + 1) * 2 * n * L          # en + de(en) batched
                         + self.P * (m * L + L * L + L * n))  # u_proj + rollout + decode
        bytes_accessed = 4 * (x.size + u.size + w_en.size
                              + w_de.size + w_k.size + 1)

        kernel = functools.partial(
            _koopman_loss_kernel, P=self.P, B=B,
            a1=a1, a2=a2, a3=a3, a4=a4, a5=a5, a6=a6)

        out = pl.pallas_call(
            kernel,
            out_shape=jax.ShapeDtypeStruct((1, 1), jnp.float32),
            in_specs=[pl.BlockSpec(memory_space=pltpu.MemorySpace.VMEM)] * 6,
            out_specs=pl.BlockSpec(memory_space=pltpu.MemorySpace.VMEM),
            cost_estimate=pl.CostEstimate(
                flops=flops, bytes_accessed=bytes_accessed, transcendentals=0),
        )(x_tm, u_tm, w_en, w_de, wk_z, wk_u)
        return out[0, 0]


def _reference_loss(x, u, w_en, w_de, w_k, a, P):
    """Pure-JAX mirror of the PyTorch Loss.forward (f32-exact matmuls)."""
    a1, a2, a3, a4, a5, a6 = a
    hi = jax.lax.Precision.HIGHEST
    en = lambda v: jnp.matmul(v, w_en.T, precision=hi)
    de = lambda v: jnp.matmul(v, w_de.T, precision=hi)
    K = lambda v: jnp.matmul(v, w_k.T, precision=hi)

    z = en(x[:, 0, :])
    en_x = en(x)
    de_en_x = de(en_x)
    lxx = lxo = lox = loo = 0.0
    for i in range(P):
        z = K(jnp.concatenate([z, u[:, i, :]], axis=1))
        pred = de(z)
        lxx += jnp.sum((x[:, i + 1, :] - pred) ** 2)
        lxo += jnp.sum((en_x[:, i + 1, :] - z) ** 2)
        lox += jnp.sum((x[:, i + 1, :] - de_en_x[:, i + 1, :]) ** 2)
        loo += (jnp.max(jnp.abs(x[:, i + 1, :] - pred))
                + jnp.max(jnp.abs(x[:, i + 1, :] - de_en_x[:, i + 1, :])))
    lxx /= P
    lxo /= P
    lox /= P
    loo /= P
    l2_en = jnp.sum(w_en ** 2)
    l2_de = jnp.sum(w_de ** 2)
    return (a1 * lox + a2 * lxx + a3 * lxo + a4 * loo
            + a5 * l2_en + a6 * l2_de)


if __name__ == "__main__":
    # Small Koopman setup: state n=8, control m=8, latent L=32, batch B=8, P=4.
    B, n, m, L, P = 8, 8, 8, 32, 4
    a = (1.0, 1.0, 0.5, 0.5, 1e-3, 1e-3)

    key = jax.random.PRNGKey(0)
    kx, ku, ke, kd, kk = jax.random.split(key, 5)
    x = jax.random.normal(kx, (B, P + 1, n), dtype=jnp.float32)
    u = jax.random.normal(ku, (B, P, m), dtype=jnp.float32)

    def init_linear(k, out_dim, in_dim):
        # PyTorch nn.Linear default init: U(-1/sqrt(in), 1/sqrt(in)), no bias.
        bound = 1.0 / (in_dim ** 0.5)
        return jax.random.uniform(k, (out_dim, in_dim), jnp.float32,
                                  -bound, bound)

    w_en = init_linear(ke, L, n)        # en: n -> L
    w_de = init_linear(kd, n, L)        # de: L -> n
    w_k = init_linear(kk, L, L + m)     # K : (L + m) -> L

    loss_mod = PallasKoopmanLoss(*a, P)
    y = jax.block_until_ready(loss_mod(x, u, w_en, w_de, w_k))

    y_ref = _reference_loss(x, u, w_en, w_de, w_k, a, P)
    assert jnp.isfinite(y)
    assert jnp.allclose(y, y_ref, rtol=1e-3, atol=1e-3), (y, y_ref)

    print("KERNEL_OK")
</pallas_src>

<mosaic_0001>
module attributes {stable_mosaic.version = 11 : i64} {
  func.func @_koopman_loss_kernel(%arg0: memref<40x8xf32, #tpu.memory_space<vmem>>, %arg1: memref<32x8xf32, #tpu.memory_space<vmem>>, %arg2: memref<32x8xf32, #tpu.memory_space<vmem>>, %arg3: memref<8x32xf32, #tpu.memory_space<vmem>>, %arg4: memref<32x32xf32, #tpu.memory_space<vmem>>, %arg5: memref<32x8xf32, #tpu.memory_space<vmem>>, %arg6: memref<1x1xf32, #tpu.memory_space<vmem>>) attributes {dimension_semantics = [], scalar_prefetch = 0 : i64, scratch_operands = 0 : i64, tpu.core_type = #tpu.core_type<tc>} {
    %c0 = arith.constant 0 : index
    %c0_0 = arith.constant 0 : index
    %0 = vector.load %arg2[%c0, %c0_0] : memref<32x8xf32, #tpu.memory_space<vmem>>, vector<32x8xf32>
    %c0_1 = arith.constant 0 : index
    %c0_2 = arith.constant 0 : index
    %1 = vector.load %arg3[%c0_1, %c0_2] : memref<8x32xf32, #tpu.memory_space<vmem>>, vector<8x32xf32>
    %c0_3 = arith.constant 0 : index
    %c0_4 = arith.constant 0 : index
    %2 = vector.load %arg4[%c0_3, %c0_4] : memref<32x32xf32, #tpu.memory_space<vmem>>, vector<32x32xf32>
    %c0_5 = arith.constant 0 : index
    %c0_6 = arith.constant 0 : index
    %3 = vector.load %arg5[%c0_5, %c0_6] : memref<32x8xf32, #tpu.memory_space<vmem>>, vector<32x8xf32>
    %c0_7 = arith.constant 0 : index
    %c0_8 = arith.constant 0 : index
    %4 = vector.load %arg0[%c0_7, %c0_8] : memref<40x8xf32, #tpu.memory_space<vmem>>, vector<40x8xf32>
    %c0_9 = arith.constant 0 : index
    %c0_10 = arith.constant 0 : index
    %5 = vector.load %arg1[%c0_9, %c0_10] : memref<32x8xf32, #tpu.memory_space<vmem>>, vector<32x8xf32>
    %cst = arith.constant dense<0.000000e+00> : vector<40x32xf32>
    %6 = tpu.matmul %4, %0, %cst {dimension_numbers = #tpu.dot_dimension_numbers<[1], [1], [0], [0], [0, 0, 1, 0], [], []>, precision = #tpu.contract_precision<fp32>} : vector<40x8xf32>, vector<32x8xf32>, vector<40x32xf32> -> vector<40x32xf32>
    %cst_11 = arith.constant dense<0.000000e+00> : vector<40x8xf32>
    %7 = tpu.matmul %6, %1, %cst_11 {dimension_numbers = #tpu.dot_dimension_numbers<[1], [1], [0], [0], [0, 0, 1, 0], [], []>, precision = #tpu.contract_precision<fp32>} : vector<40x32xf32>, vector<8x32xf32>, vector<40x8xf32> -> vector<40x8xf32>
    %cst_12 = arith.constant dense<0.000000e+00> : vector<32x32xf32>
    %8 = tpu.matmul %5, %3, %cst_12 {dimension_numbers = #tpu.dot_dimension_numbers<[1], [1], [0], [0], [0, 0, 1, 0], [], []>, precision = #tpu.contract_precision<fp32>} : vector<32x8xf32>, vector<32x8xf32>, vector<32x32xf32> -> vector<32x32xf32>
    %9 = vector.extract_strided_slice %6 {offsets = [0, 0], sizes = [8, 32], strides = [1, 1]} : vector<40x32xf32> to vector<8x32xf32>
    %cst_13 = arith.constant dense<0.000000e+00> : vector<8x32xf32>
    %10 = tpu.matmul %9, %2, %cst_13 {dimension_numbers = #tpu.dot_dimension_numbers<[1], [1], [0], [0], [0, 0, 1, 0], [], []>, precision = #tpu.contract_precision<fp32>} : vector<8x32xf32>, vector<32x32xf32>, vector<8x32xf32> -> vector<8x32xf32>
    %11 = vector.extract_strided_slice %8 {offsets = [0, 0], sizes = [8, 32], strides = [1, 1]} : vector<32x32xf32> to vector<8x32xf32>
    %12 = arith.addf %10, %11 : vector<8x32xf32>
    %cst_14 = arith.constant dense<0.000000e+00> : vector<8x32xf32>
    %13 = tpu.matmul %12, %2, %cst_14 {dimension_numbers = #tpu.dot_dimension_numbers<[1], [1], [0], [0], [0, 0, 1, 0], [], []>, precision = #tpu.contract_precision<fp32>} : vector<8x32xf32>, vector<32x32xf32>, vector<8x32xf32> -> vector<8x32xf32>
    %14 = vector.extract_strided_slice %8 {offsets = [8, 0], sizes = [8, 32], strides = [1, 1]} : vector<32x32xf32> to vector<8x32xf32>
    %15 = arith.addf %13, %14 : vector<8x32xf32>
    %cst_15 = arith.constant dense<0.000000e+00> : vector<8x32xf32>
    %16 = tpu.matmul %15, %2, %cst_15 {dimension_numbers = #tpu.dot_dimension_numbers<[1], [1], [0], [0], [0, 0, 1, 0], [], []>, precision = #tpu.contract_precision<fp32>} : vector<8x32xf32>, vector<32x32xf32>, vector<8x32xf32> -> vector<8x32xf32>
    %17 = vector.extract_strided_slice %8 {offsets = [16, 0], sizes = [8, 32], strides = [1, 1]} : vector<32x32xf32> to vector<8x32xf32>
    %18 = arith.addf %16, %17 : vector<8x32xf32>
    %cst_16 = arith.constant dense<0.000000e+00> : vector<8x32xf32>
    %19 = tpu.matmul %18, %2, %cst_16 {dimension_numbers = #tpu.dot_dimension_numbers<[1], [1], [0], [0], [0, 0, 1, 0], [], []>, precision = #tpu.contract_precision<fp32>} : vector<8x32xf32>, vector<32x32xf32>, vector<8x32xf32> -> vector<8x32xf32>
    %20 = vector.extract_strided_slice %8 {offsets = [24, 0], sizes = [8, 32], strides = [1, 1]} : vector<32x32xf32> to vector<8x32xf32>
    %21 = arith.addf %19, %20 : vector<8x32xf32>
    %22 = tpu.concatenate %12, %15, %18, %21 in 0 : vector<8x32xf32>, vector<8x32xf32>, vector<8x32xf32>, vector<8x32xf32> -> vector<32x32xf32>
    %cst_17 = arith.constant dense<0.000000e+00> : vector<32x8xf32>
    %23 = tpu.matmul %22, %1, %cst_17 {dimension_numbers = #tpu.dot_dimension_numbers<[1], [1], [0], [0], [0, 0, 1, 0], [], []>, precision = #tpu.contract_precision<fp32>} : vector<32x32xf32>, vector<8x32xf32>, vector<32x8xf32> -> vector<32x8xf32>
    %24 = vector.extract_strided_slice %4 {offsets = [8, 0], sizes = [32, 8], strides = [1, 1]} : vector<40x8xf32> to vector<32x8xf32>
    %25 = vector.extract_strided_slice %6 {offsets = [8, 0], sizes = [32, 32], strides = [1, 1]} : vector<40x32xf32> to vector<32x32xf32>
    %26 = vector.extract_strided_slice %7 {offsets = [8, 0], sizes = [32, 8], strides = [1, 1]} : vector<40x8xf32> to vector<32x8xf32>
    %27 = arith.subf %24, %23 : vector<32x8xf32>
    %28 = arith.subf %25, %22 : vector<32x32xf32>
    %29 = arith.subf %24, %26 : vector<32x8xf32>
    %30 = arith.mulf %27, %27 : vector<32x8xf32>
    %31 = vector.shape_cast %30 : vector<32x8xf32> to vector<1x32x8xf32>
    %cst_18 = arith.constant dense<0.000000e+00> : vector<1xf32>
    %32 = vector.multi_reduction <add>, %31, %cst_18 [1, 2] : vector<1x32x8xf32> to vector<1xf32>
    %33 = vector.shape_cast %32 : vector<1xf32> to vector<1x1x1xf32>
    %34 = vector.extract %33[0, 0, 0] : f32 from vector<1x1x1xf32>
    %35 = vector.broadcast %34 : f32 to vector<1x1xf32>
    %36 = arith.mulf %28, %28 : vector<32x32xf32>
    %37 = vector.shape_cast %36 : vector<32x32xf32> to vector<1x32x32xf32>
    %cst_19 = arith.constant dense<0.000000e+00> : vector<1xf32>
    %38 = vector.multi_reduction <add>, %37, %cst_19 [1, 2] : vector<1x32x32xf32> to vector<1xf32>
    %39 = vector.shape_cast %38 : vector<1xf32> to vector<1x1x1xf32>
    %40 = vector.extract %39[0, 0, 0] : f32 from vector<1x1x1xf32>
    %41 = vector.broadcast %40 : f32 to vector<1x1xf32>
    %42 = arith.mulf %29, %29 : vector<32x8xf32>
    %43 = vector.shape_cast %42 : vector<32x8xf32> to vector<1x32x8xf32>
    %cst_20 = arith.constant dense<0.000000e+00> : vector<1xf32>
    %44 = vector.multi_reduction <add>, %43, %cst_20 [1, 2] : vector<1x32x8xf32> to vector<1xf32>
    %45 = vector.shape_cast %44 : vector<1xf32> to vector<1x1x1xf32>
    %46 = vector.extract %45[0, 0, 0] : f32 from vector<1x1x1xf32>
    %47 = vector.broadcast %46 : f32 to vector<1x1xf32>
    %48 = math.absf %27 : vector<32x8xf32>
    %49 = math.absf %29 : vector<32x8xf32>
    %cst_21 = arith.constant 0.000000e+00 : f32
    %50 = vector.broadcast %cst_21 : f32 to vector<1x1xf32>
    %51 = vector.extract_strided_slice %48 {offsets = [0, 0], sizes = [8, 8], strides = [1, 1]} : vector<32x8xf32> to vector<8x8xf32>
    %52 = vector.shape_cast %51 : vector<8x8xf32> to vector<1x8x8xf32>
    %cst_22 = arith.constant dense<0xFF800000> : vector<1xf32>
    %53 = vector.multi_reduction <maximumf>, %52, %cst_22 [1, 2] : vector<1x8x8xf32> to vector<1xf32>
    %54 = vector.shape_cast %53 : vector<1xf32> to vector<1x1x1xf32>
    %55 = vector.extract %54[0, 0, 0] : f32 from vector<1x1x1xf32>
    %56 = vector.broadcast %55 : f32 to vector<1x1xf32>
    %57 = vector.extract_strided_slice %49 {offsets = [0, 0], sizes = [8, 8], strides = [1, 1]} : vector<32x8xf32> to vector<8x8xf32>
    %58 = vector.shape_cast %57 : vector<8x8xf32> to vector<1x8x8xf32>
    %cst_23 = arith.constant dense<0xFF800000> : vector<1xf32>
    %59 = vector.multi_reduction <maximumf>, %58, %cst_23 [1, 2] : vector<1x8x8xf32> to vector<1xf32>
    %60 = vector.shape_cast %59 : vector<1xf32> to vector<1x1x1xf32>
    %61 = vector.extract %60[0, 0, 0] : f32 from vector<1x1x1xf32>
    %62 = vector.broadcast %61 : f32 to vector<1x1xf32>
    %63 = arith.addf %56, %62 : vector<1x1xf32>
    %64 = arith.addf %50, %63 : vector<1x1xf32>
    %65 = vector.extract_strided_slice %48 {offsets = [8, 0], sizes = [8, 8], strides = [1, 1]} : vector<32x8xf32> to vector<8x8xf32>
    %66 = vector.shape_cast %65 : vector<8x8xf32> to vector<1x8x8xf32>
    %cst_24 = arith.constant dense<0xFF800000> : vector<1xf32>
    %67 = vector.multi_reduction <maximumf>, %66, %cst_24 [1, 2] : vector<1x8x8xf32> to vector<1xf32>
    %68 = vector.shape_cast %67 : vector<1xf32> to vector<1x1x1xf32>
    %69 = vector.extract %68[0, 0, 0] : f32 from vector<1x1x1xf32>
    %70 = vector.broadcast %69 : f32 to vector<1x1xf32>
    %71 = vector.extract_strided_slice %49 {offsets = [8, 0], sizes = [8, 8], strides = [1, 1]} : vector<32x8xf32> to vector<8x8xf32>
    %72 = vector.shape_cast %71 : vector<8x8xf32> to vector<1x8x8xf32>
    %cst_25 = arith.constant dense<0xFF800000> : vector<1xf32>
    %73 = vector.multi_reduction <maximumf>, %72, %cst_25 [1, 2] : vector<1x8x8xf32> to vector<1xf32>
    %74 = vector.shape_cast %73 : vector<1xf32> to vector<1x1x1xf32>
    %75 = vector.extract %74[0, 0, 0] : f32 from vector<1x1x1xf32>
    %76 = vector.broadcast %75 : f32 to vector<1x1xf32>
    %77 = arith.addf %70, %76 : vector<1x1xf32>
    %78 = arith.addf %64, %77 : vector<1x1xf32>
    %79 = vector.extract_strided_slice %48 {offsets = [16, 0], sizes = [8, 8], strides = [1, 1]} : vector<32x8xf32> to vector<8x8xf32>
    %80 = vector.shape_cast %79 : vector<8x8xf32> to vector<1x8x8xf32>
    %cst_26 = arith.constant dense<0xFF800000> : vector<1xf32>
    %81 = vector.multi_reduction <maximumf>, %80, %cst_26 [1, 2] : vector<1x8x8xf32> to vector<1xf32>
    %82 = vector.shape_cast %81 : vector<1xf32> to vector<1x1x1xf32>
    %83 = vector.extract %82[0, 0, 0] : f32 from vector<1x1x1xf32>
    %84 = vector.broadcast %83 : f32 to vector<1x1xf32>
    %85 = vector.extract_strided_slice %49 {offsets = [16, 0], sizes = [8, 8], strides = [1, 1]} : vector<32x8xf32> to vector<8x8xf32>
    %86 = vector.shape_cast %85 : vector<8x8xf32> to vector<1x8x8xf32>
    %cst_27 = arith.constant dense<0xFF800000> : vector<1xf32>
    %87 = vector.multi_reduction <maximumf>, %86, %cst_27 [1, 2] : vector<1x8x8xf32> to vector<1xf32>
    %88 = vector.shape_cast %87 : vector<1xf32> to vector<1x1x1xf32>
    %89 = vector.extract %88[0, 0, 0] : f32 from vector<1x1x1xf32>
    %90 = vector.broadcast %89 : f32 to vector<1x1xf32>
    %91 = arith.addf %84, %90 : vector<1x1xf32>
    %92 = arith.addf %78, %91 : vector<1x1xf32>
    %93 = vector.extract_strided_slice %48 {offsets = [24, 0], sizes = [8, 8], strides = [1, 1]} : vector<32x8xf32> to vector<8x8xf32>
    %94 = vector.shape_cast %93 : vector<8x8xf32> to vector<1x8x8xf32>
    %cst_28 = arith.constant dense<0xFF800000> : vector<1xf32>
    %95 = vector.multi_reduction <maximumf>, %94, %cst_28 [1, 2] : vector<1x8x8xf32> to vector<1xf32>
    %96 = vector.shape_cast %95 : vector<1xf32> to vector<1x1x1xf32>
    %97 = vector.extract %96[0, 0, 0] : f32 from vector<1x1x1xf32>
    %98 = vector.broadcast %97 : f32 to vector<1x1xf32>
    %99 = vector.extract_strided_slice %49 {offsets = [24, 0], sizes = [8, 8], strides = [1, 1]} : vector<32x8xf32> to vector<8x8xf32>
    %100 = vector.shape_cast %99 : vector<8x8xf32> to vector<1x8x8xf32>
    %cst_29 = arith.constant dense<0xFF800000> : vector<1xf32>
    %101 = vector.multi_reduction <maximumf>, %100, %cst_29 [1, 2] : vector<1x8x8xf32> to vector<1xf32>
    %102 = vector.shape_cast %101 : vector<1xf32> to vector<1x1x1xf32>
    %103 = vector.extract %102[0, 0, 0] : f32 from vector<1x1x1xf32>
    %104 = vector.broadcast %103 : f32 to vector<1x1xf32>
    %105 = arith.addf %98, %104 : vector<1x1xf32>
    %106 = arith.addf %92, %105 : vector<1x1xf32>
    %107 = arith.mulf %0, %0 : vector<32x8xf32>
    %108 = vector.shape_cast %107 : vector<32x8xf32> to vector<1x32x8xf32>
    %cst_30 = arith.constant dense<0.000000e+00> : vector<1xf32>
    %109 = vector.multi_reduction <add>, %108, %cst_30 [1, 2] : vector<1x32x8xf32> to vector<1xf32>
    %110 = vector.shape_cast %109 : vector<1xf32> to vector<1x1x1xf32>
    %111 = vector.extract %110[0, 0, 0] : f32 from vector<1x1x1xf32>
    %112 = vector.broadcast %111 : f32 to vector<1x1xf32>
    %113 = arith.mulf %1, %1 : vector<8x32xf32>
    %114 = vector.shape_cast %113 : vector<8x32xf32> to vector<1x8x32xf32>
    %cst_31 = arith.constant dense<0.000000e+00> : vector<1xf32>
    %115 = vector.multi_reduction <add>, %114, %cst_31 [1, 2] : vector<1x8x32xf32> to vector<1xf32>
    %116 = vector.shape_cast %115 : vector<1xf32> to vector<1x1x1xf32>
    %117 = vector.extract %116[0, 0, 0] : f32 from vector<1x1x1xf32>
    %118 = vector.broadcast %117 : f32 to vector<1x1xf32>
    %cst_32 = arith.constant 2.500000e-01 : f32
    %119 = vector.broadcast %cst_32 : f32 to vector<1x1xf32>
    %120 = arith.mulf %119, %47 : vector<1x1xf32>
    %cst_33 = arith.constant 2.500000e-01 : f32
    %121 = vector.broadcast %cst_33 : f32 to vector<1x1xf32>
    %122 = arith.mulf %121, %35 : vector<1x1xf32>
    %123 = arith.addf %120, %122 : vector<1x1xf32>
    %cst_34 = arith.constant 1.250000e-01 : f32
    %124 = vector.broadcast %cst_34 : f32 to vector<1x1xf32>
    %125 = arith.mulf %124, %41 : vector<1x1xf32>
    %126 = arith.addf %123, %125 : vector<1x1xf32>
    %cst_35 = arith.constant 1.250000e-01 : f32
    %127 = vector.broadcast %cst_35 : f32 to vector<1x1xf32>
    %128 = arith.mulf %127, %106 : vector<1x1xf32>
    %129 = arith.addf %126, %128 : vector<1x1xf32>
    %cst_36 = arith.constant 1.000000e-03 : f32
    %130 = vector.broadcast %cst_36 : f32 to vector<1x1xf32>
    %131 = arith.mulf %130, %112 : vector<1x1xf32>
    %132 = arith.addf %129, %131 : vector<1x1xf32>
    %cst_37 = arith.constant 1.000000e-03 : f32
    %133 = vector.broadcast %cst_37 : f32 to vector<1x1xf32>
    %134 = arith.mulf %133, %118 : vector<1x1xf32>
    %135 = arith.addf %132, %134 : vector<1x1xf32>
    %c0_38 = arith.constant 0 : index
    %c0_39 = arith.constant 0 : index
    %136 = vector.load %arg6[%c0_38, %c0_39] : memref<1x1xf32, #tpu.memory_space<vmem>>, vector<1x1xf32>
    tpu.vector_store %arg6[%c0_38, %c0_39], %135 {strides = array<i32>} : memref<1x1xf32, #tpu.memory_space<vmem>>, vector<1x1xf32>,
    return
  }
}

</mosaic_0001>

<llo_original>
// kernel: tpu_custom_call.1
$region0: #{tpu_custom_call.1}
  #allocation0 [shape = 'u32[]', space=smem, size = 0x4, offset = 0x4, fixed_abs, tag = 'smem constant byte address 0x4 - core index']
  #allocation1 [shape = 'u32[72,128]{1,0:T(1,128)}', space=vmem, size = 0x9000, scoped, tag = 'internal scratch']
  %s0 = inlined_call_operand.vmem [shape: f32[40,8], index: 0, kind: input, shape index: {}]
  %s1 = inlined_call_operand.vmem [shape: f32[32,8], index: 1, kind: input, shape index: {}]
  %s2 = inlined_call_operand.vmem [shape: f32[32,8], index: 2, kind: input, shape index: {}]
  %s3 = inlined_call_operand.vmem [shape: f32[8,32], index: 3, kind: input, shape index: {}]
  %s4 = inlined_call_operand.vmem [shape: f32[32,32], index: 4, kind: input, shape index: {}]
  %s5 = inlined_call_operand.vmem [shape: f32[32,8], index: 5, kind: input, shape index: {}]
  %s6 = inlined_call_operand.hbm [shape: f32[1,1], index: 6, kind: output, shape index: {}]
  %s7 = sld [smem:[#allocation0]]
  $region34: #{tpu_custom_call.1} parent=0
    _
  %s9 = ssub.s32 1, %s7
  %s10 = scalar_select 0, %s9, %s7
  $region1: #{tpu_custom_call.1} parent=0
    #allocation2 [shape = 'u8[512]{0}', space=vmem, size = 0x400, scoped, tag = 'output window, operand 0, single buffered']
    #allocation3 [shape = 's32[1]{0}', space=sflag, size = 0x4, scoped, tag = 'scoped memory for tpu_custom_call.1']
    %11 = vsyncpa [#allocation3], 0
    // Predicated region
    $region2: #{tpu_custom_call.1} parent=1 // pred_check
      _
    $region3: #{tpu_custom_call.1} parent=1 // pred_check_branch
      %13 = sbr.rel (0) target = $region5
    $region4: #{tpu_custom_call.1} parent=1 // pred_region
      _
    $region5: #{tpu_custom_call.1} parent=1 // pred_fallthru
      _
    // Predicated region
    $region6: #{tpu_custom_call.1} parent=1 // pred_check
      _
    $region7: #{tpu_custom_call.1} parent=1 // pred_check_branch
      %15 = sbr.rel (0) target = $region9
    $region8: #{tpu_custom_call.1} parent=1 // pred_region
      _
    $region9: #{tpu_custom_call.1} parent=1 // pred_fallthru
      _
    // Predicated region
    $region10: #{tpu_custom_call.1} parent=1 // pred_check
      _
    $region11: #{tpu_custom_call.1} parent=1 // pred_check_branch
      %17 = sbr.rel (0) target = $region13
    $region12: #{tpu_custom_call.1} parent=1 // pred_region
      _
    $region13: #{tpu_custom_call.1} parent=1 // pred_fallthru
      _
    // Predicated region
    $region14: #{tpu_custom_call.1} parent=1 // pred_check
      _
    $region15: #{tpu_custom_call.1} parent=1 // pred_check_branch
      %19 = sbr.rel (0) target = $region17
    $region16: #{tpu_custom_call.1} parent=1 // pred_region
      _
    $region17: #{tpu_custom_call.1} parent=1 // pred_fallthru
      _
    // Predicated region
    $region18: #{tpu_custom_call.1} parent=1 // pred_check
      _
    $region19: #{tpu_custom_call.1} parent=1 // pred_check_branch
      %21 = sbr.rel (0) target = $region21
    $region20: #{tpu_custom_call.1} parent=1 // pred_region
      _
    $region21: #{tpu_custom_call.1} parent=1 // pred_fallthru
      _
    // Predicated region
    $region22: #{tpu_custom_call.1} parent=1 // pred_check
      _
    $region23: #{tpu_custom_call.1} parent=1 // pred_check_branch
      %23 = sbr.rel (0) target = $region25
    $region24: #{tpu_custom_call.1} parent=1 // pred_region
      _
    $region25: #{tpu_custom_call.1} parent=1 // pred_fallthru
      _
    %v24 = vld [vmem:[%s2] sm:$0xff]
    %v25 = vld [vmem:[%s2 + $0x8] sm:$0xff]
    %v26 = vld [vmem:[%s2 + $0x10] sm:$0xff]
    %v27 = vld [vmem:[%s2 + $0x18] sm:$0xff]
    %v28 = vld [vmem:[%s3] sm:$0xff]
    %v29 = vld [vmem:[%s4] sm:$0xff]
    %v30 = vld [vmem:[%s4 + $0x8] sm:$0xff]
    %v31 = vld [vmem:[%s4 + $0x10] sm:$0xff]
    %v32 = vld [vmem:[%s4 + $0x18] sm:$0xff]
    %v33 = vld [vmem:[%s5] sm:$0xff]
    %v34 = vld [vmem:[%s5 + $0x8] sm:$0xff]
    %v35 = vld [vmem:[%s5 + $0x10] sm:$0xff]
    %v36 = vld [vmem:[%s5 + $0x18] sm:$0xff]
    %v37 = vld [vmem:[%s0] sm:$0xff]
    %v38 = vld [vmem:[%s0 + $0x8] sm:$0xff]
    %v39 = vld [vmem:[%s0 + $0x10] sm:$0xff]
    %v40 = vld [vmem:[%s0 + $0x18] sm:$0xff]
    %v41 = vld [vmem:[%s0 + $0x20] sm:$0xff]
    %v42 = vld [vmem:[%s1] sm:$0xff]
    %v43 = vld [vmem:[%s1 + $0x8] sm:$0xff]
    %v44 = vld [vmem:[%s1 + $0x10] sm:$0xff]
    %v45 = vld [vmem:[%s1 + $0x18] sm:$0xff]
    %vm46 = vcmask 64512
    %v48 = vsel %vm46, %v37, 0
    %v51 = vsel %vm46, %v38, 0
    %v54 = vsel %vm46, %v39, 0
    %v57 = vsel %vm46, %v40, 0
    %v60 = vsel %vm46, %v41, 0
    %v63 = vsel %vm46, %v24, 0
    %v66 = vsel %vm46, %v25, 0
    %v69 = vsel %vm46, %v26, 0
    %v72 = vsel %vm46, %v27, 0
    %74 = vmatpush.xpose.msra.mxu0 0.0
    %75 = vmatpush.xpose.msra.mxu0 0.0
    %76 = vmatpush.xpose.msra.mxu0 0.0
    %77 = vmatpush.xpose.msra.mxu0 0.0
    %78 = vmatpush.xpose.msra.mxu0 0.0
    %79 = vmatpush.xpose.msra.mxu0 0.0
    %80 = vmatpush.xpose.msra.mxu0 0.0
    %81 = vmatpush.xpose.msra.mxu0 0.0
    %82 = vmatpush.xpose.msra.mxu0 0.0
    %83 = vmatpush.xpose.msra.mxu0 0.0
    %84 = vmatpush.xpose.msra.mxu0 0.0
    %85 = vmatpush.xpose.msra.mxu0 0.0
    %v86 = vand.u32 %v72, 4294901760
    %87 = vmatpush.xpose.msra.mxu0 %v86
    %v88 = vand.u32 %v69, 4294901760
    %89 = vmatpush.xpose.msra.mxu0 %v88
    %v90 = vand.u32 %v66, 4294901760
    %91 = vmatpush.xpose.msra.mxu0 %v90
    %v92 = vand.u32 %v63, 4294901760
    %93 = vmatpush.xpose.msra.mxu0 %v92
    %v94 = vand.u32 %v48, 4294901760
    %v95 = vsub.f32 %v48, %v94
    %v96 = vand.u32 %v95, 4294901760
    %v97 = vsub.f32 %v95, %v96
    %v98 = vand.u32 %v97, 4294901760
    %99 = vmatmul.f32.gmra.mxu0 %v98
    %v100 = vpop.f32.mrf.mxu0
    %v101 = vadd.f32 0.0, %v100
    %v102 = vand.u32 %v51, 4294901760
    %v103 = vsub.f32 %v51, %v102
    %v104 = vand.u32 %v103, 4294901760
    %v105 = vsub.f32 %v103, %v104
    %v106 = vand.u32 %v105, 4294901760
    %107 = vmatmul.f32.gmra.mxu0 %v106
    %v108 = vpop.f32.mrf.mxu0
    %v109 = vadd.f32 0.0, %v108
    %v110 = vand.u32 %v54, 4294901760
    %v111 = vsub.f32 %v54, %v110
    %v112 = vand.u32 %v111, 4294901760
    %v113 = vsub.f32 %v111, %v112
    %v114 = vand.u32 %v113, 4294901760
    %115 = vmatmul.f32.gmra.mxu0 %v114
    %v116 = vpop.f32.mrf.mxu0
    %v117 = vadd.f32 0.0, %v116
    %v118 = vand.u32 %v57, 4294901760
    %v119 = vsub.f32 %v57, %v118
    %v120 = vand.u32 %v119, 4294901760
    %v121 = vsub.f32 %v119, %v120
    %v122 = vand.u32 %v121, 4294901760
    %123 = vmatmul.f32.gmra.mxu0 %v122
    %v124 = vpop.f32.mrf.mxu0
    %v125 = vadd.f32 0.0, %v124
    %v126 = vand.u32 %v60, 4294901760
    %v127 = vsub.f32 %v60, %v126
    %v128 = vand.u32 %v127, 4294901760
    %v129 = vsub.f32 %v127, %v128
    %v130 = vand.u32 %v129, 4294901760
    %131 = vmatmul.f32.gmra.mxu0 %v130
    %v132 = vpop.f32.mrf.mxu0
    %v133 = vadd.f32 0.0, %v132
    %134 = vdwg.mxu0
    %135 = vmatpush.xpose.msra.mxu0 0.0
    %136 = vmatpush.xpose.msra.mxu0 0.0
    %137 = vmatpush.xpose.msra.mxu0 0.0
    %138 = vmatpush.xpose.msra.mxu0 0.0
    %139 = vmatpush.xpose.msra.mxu0 0.0
    %140 = vmatpush.xpose.msra.mxu0 0.0
    %141 = vmatpush.xpose.msra.mxu0 0.0
    %142 = vmatpush.xpose.msra.mxu0 0.0
    %143 = vmatpush.xpose.msra.mxu0 0.0
    %144 = vmatpush.xpose.msra.mxu0 0.0
    %145 = vmatpush.xpose.msra.mxu0 0.0
    %146 = vmatpush.xpose.msra.mxu0 0.0
    %v147 = vand.u32 %v72, 4294901760
    %v148 = vsub.f32 %v72, %v147
    %v149 = vand.u32 %v148, 4294901760
    %v150 = vsub.f32 %v148, %v149
    %v151 = vand.u32 %v150, 4294901760
    %152 = vmatpush.xpose.msra.mxu0 %v151
    %v153 = vand.u32 %v69, 4294901760
    %v154 = vsub.f32 %v69, %v153
    %v155 = vand.u32 %v154, 4294901760
    %v156 = vsub.f32 %v154, %v155
    %v157 = vand.u32 %v156, 4294901760
    %158 = vmatpush.xpose.msra.mxu0 %v157
    %v159 = vand.u32 %v66, 4294901760
    %v160 = vsub.f32 %v66, %v159
    %v161 = vand.u32 %v160, 4294901760
    %v162 = vsub.f32 %v160, %v161
    %v163 = vand.u32 %v162, 4294901760
    %164 = vmatpush.xpose.msra.mxu0 %v163
    %v165 = vand.u32 %v63, 4294901760
    %v166 = vsub.f32 %v63, %v165
    %v167 = vand.u32 %v166, 4294901760
    %v168 = vsub.f32 %v166, %v167
    %v169 = vand.u32 %v168, 4294901760
    %170 = vmatpush.xpose.msra.mxu0 %v169
    %v171 = vand.u32 %v48, 4294901760
    %172 = vmatmul.f32.gmra.mxu0 %v171
    %v173 = vpop.f32.mrf.mxu0
    %v174 = vadd.f32 %v101, %v173
    %v175 = vand.u32 %v51, 4294901760
    %176 = vmatmul.f32.gmra.mxu0 %v175
    %v177 = vpop.f32.mrf.mxu0
    %v178 = vadd.f32 %v109, %v177
    %v179 = vand.u32 %v54, 4294901760
    %180 = vmatmul.f32.gmra.mxu0 %v179
    %v181 = vpop.f32.mrf.mxu0
    %v182 = vadd.f32 %v117, %v181
    %v183 = vand.u32 %v57, 4294901760
    %184 = vmatmul.f32.gmra.mxu0 %v183
    %v185 = vpop.f32.mrf.mxu0
    %v186 = vadd.f32 %v125, %v185
    %v187 = vand.u32 %v60, 4294901760
    %188 = vmatmul.f32.gmra.mxu0 %v187
    %v189 = vpop.f32.mrf.mxu0
    %v190 = vadd.f32 %v133, %v189
    %191 = vdwg.mxu0
    %192 = vmatpush.xpose.msra.mxu0 0.0
    %193 = vmatpush.xpose.msra.mxu0 0.0
    %194 = vmatpush.xpose.msra.mxu0 0.0
    %195 = vmatpush.xpose.msra.mxu0 0.0
    %196 = vmatpush.xpose.msra.mxu0 0.0
    %197 = vmatpush.xpose.msra.mxu0 0.0
    %198 = vmatpush.xpose.msra.mxu0 0.0
    %199 = vmatpush.xpose.msra.mxu0 0.0
    %200 = vmatpush.xpose.msra.mxu0 0.0
    %201 = vmatpush.xpose.msra.mxu0 0.0
    %202 = vmatpush.xpose.msra.mxu0 0.0
    %203 = vmatpush.xpose.msra.mxu0 0.0
    %v204 = vand.u32 %v72, 4294901760
    %v205 = vsub.f32 %v72, %v204
    %206 = vmatpush.xpose.msra.mxu0 %v205
    %v207 = vand.u32 %v69, 4294901760
    %v208 = vsub.f32 %v69, %v207
    %209 = vmatpush.xpose.msra.mxu0 %v208
    %v210 = vand.u32 %v66, 4294901760
    %v211 = vsub.f32 %v66, %v210
    %212 = vmatpush.xpose.msra.mxu0 %v211
    %v213 = vand.u32 %v63, 4294901760
    %v214 = vsub.f32 %v63, %v213
    %215 = vmatpush.xpose.msra.mxu0 %v214
    %v216 = vand.u32 %v48, 4294901760
    %v217 = vsub.f32 %v48, %v216
    %218 = vmatmul.f32.gmra.mxu0 %v217
    %v219 = vpop.f32.mrf.mxu0
    %v220 = vadd.f32 %v174, %v219
    %v221 = vand.u32 %v51, 4294901760
    %v222 = vsub.f32 %v51, %v221
    %223 = vmatmul.f32.gmra.mxu0 %v222
    %v224 = vpop.f32.mrf.mxu0
    %v225 = vadd.f32 %v178, %v224
    %v226 = vand.u32 %v54, 4294901760
    %v227 = vsub.f32 %v54, %v226
    %228 = vmatmul.f32.gmra.mxu0 %v227
    %v229 = vpop.f32.mrf.mxu0
    %v230 = vadd.f32 %v182, %v229
    %v231 = vand.u32 %v57, 4294901760
    %v232 = vsub.f32 %v57, %v231
    %233 = vmatmul.f32.gmra.mxu0 %v232
    %v234 = vpop.f32.mrf.mxu0
    %v235 = vadd.f32 %v186, %v234
    %v236 = vand.u32 %v60, 4294901760
    %v237 = vsub.f32 %v60, %v236
    %238 = vmatmul.f32.gmra.mxu0 %v237
    %v239 = vpop.f32.mrf.mxu0
    %v240 = vadd.f32 %v190, %v239
    %241 = vdwg.mxu0
    %242 = vmatpush.xpose.msra.mxu0 0.0
    %243 = vmatpush.xpose.msra.mxu0 0.0
    %244 = vmatpush.xpose.msra.mxu0 0.0
    %245 = vmatpush.xpose.msra.mxu0 0.0
    %246 = vmatpush.xpose.msra.mxu0 0.0
    %247 = vmatpush.xpose.msra.mxu0 0.0
    %248 = vmatpush.xpose.msra.mxu0 0.0
    %249 = vmatpush.xpose.msra.mxu0 0.0
    %250 = vmatpush.xpose.msra.mxu0 0.0
    %251 = vmatpush.xpose.msra.mxu0 0.0
    %252 = vmatpush.xpose.msra.mxu0 0.0
    %253 = vmatpush.xpose.msra.mxu0 0.0
    %v254 = vand.u32 %v72, 4294901760
    %255 = vmatpush.xpose.msra.mxu0 %v254
    %v256 = vand.u32 %v69, 4294901760
    %257 = vmatpush.xpose.msra.mxu0 %v256
    %v258 = vand.u32 %v66, 4294901760
    %259 = vmatpush.xpose.msra.mxu0 %v258
    %v260 = vand.u32 %v63, 4294901760
    %261 = vmatpush.xpose.msra.mxu0 %v260
    %v262 = vand.u32 %v48, 4294901760
    %v263 = vsub.f32 %v48, %v262
    %v264 = vand.u32 %v263, 4294901760
    %265 = vmatmul.f32.gmra.mxu0 %v264
    %v266 = vpop.f32.mrf.mxu0
    %v267 = vadd.f32 %v220, %v266
    %v268 = vand.u32 %v51, 4294901760
    %v269 = vsub.f32 %v51, %v268
    %v270 = vand.u32 %v269, 4294901760
    %271 = vmatmul.f32.gmra.mxu0 %v270
    %v272 = vpop.f32.mrf.mxu0
    %v273 = vadd.f32 %v225, %v272
    %v274 = vand.u32 %v54, 4294901760
    %v275 = vsub.f32 %v54, %v274
    %v276 = vand.u32 %v275, 4294901760
    %277 = vmatmul.f32.gmra.mxu0 %v276
    %v278 = vpop.f32.mrf.mxu0
    %v279 = vadd.f32 %v230, %v278
    %v280 = vand.u32 %v57, 4294901760
    %v281 = vsub.f32 %v57, %v280
    %v282 = vand.u32 %v281, 4294901760
    %283 = vmatmul.f32.gmra.mxu0 %v282
    %v284 = vpop.f32.mrf.mxu0
    %v285 = vadd.f32 %v235, %v284
    %v286 = vand.u32 %v60, 4294901760
    %v287 = vsub.f32 %v60, %v286
    %v288 = vand.u32 %v287, 4294901760
    %289 = vmatmul.f32.gmra.mxu0 %v288
    %v290 = vpop.f32.mrf.mxu0
    %v291 = vadd.f32 %v240, %v290
    %292 = vdwg.mxu0
    %293 = vmatpush.xpose.msra.mxu0 0.0
    %294 = vmatpush.xpose.msra.mxu0 0.0
    %295 = vmatpush.xpose.msra.mxu0 0.0
    %296 = vmatpush.xpose.msra.mxu0 0.0
    %297 = vmatpush.xpose.msra.mxu0 0.0
    %298 = vmatpush.xpose.msra.mxu0 0.0
    %299 = vmatpush.xpose.msra.mxu0 0.0
    %300 = vmatpush.xpose.msra.mxu0 0.0
    %301 = vmatpush.xpose.msra.mxu0 0.0
    %302 = vmatpush.xpose.msra.mxu0 0.0
    %303 = vmatpush.xpose.msra.mxu0 0.0
    %304 = vmatpush.xpose.msra.mxu0 0.0
    %v305 = vand.u32 %v72, 4294901760
    %v306 = vsub.f32 %v72, %v305
    %v307 = vand.u32 %v306, 4294901760
    %308 = vmatpush.xpose.msra.mxu0 %v307
    %v309 = vand.u32 %v69, 4294901760
    %v310 = vsub.f32 %v69, %v309
    %v311 = vand.u32 %v310, 4294901760
    %312 = vmatpush.xpose.msra.mxu0 %v311
    %v313 = vand.u32 %v66, 4294901760
    %v314 = vsub.f32 %v66, %v313
    %v315 = vand.u32 %v314, 4294901760
    %316 = vmatpush.xpose.msra.mxu0 %v315
    %v317 = vand.u32 %v63, 4294901760
    %v318 = vsub.f32 %v63, %v317
    %v319 = vand.u32 %v318, 4294901760
    %320 = vmatpush.xpose.msra.mxu0 %v319
    %v321 = vand.u32 %v48, 4294901760
    %322 = vmatmul.f32.gmra.mxu0 %v321
    %v323 = vpop.f32.mrf.mxu0
    %v324 = vadd.f32 %v267, %v323
    %v325 = vand.u32 %v51, 4294901760
    %326 = vmatmul.f32.gmra.mxu0 %v325
    %v327 = vpop.f32.mrf.mxu0
    %v328 = vadd.f32 %v273, %v327
    %v329 = vand.u32 %v54, 4294901760
    %330 = vmatmul.f32.gmra.mxu0 %v329
    %v331 = vpop.f32.mrf.mxu0
    %v332 = vadd.f32 %v279, %v331
    %v333 = vand.u32 %v57, 4294901760
    %334 = vmatmul.f32.gmra.mxu0 %v333
    %v335 = vpop.f32.mrf.mxu0
    %v336 = vadd.f32 %v285, %v335
    %v337 = vand.u32 %v60, 4294901760
    %338 = vmatmul.f32.gmra.mxu0 %v337
    %v339 = vpop.f32.mrf.mxu0
    %v340 = vadd.f32 %v291, %v339
    %341 = vdwg.mxu0
    %342 = vmatpush.xpose.msra.mxu0 0.0
    %343 = vmatpush.xpose.msra.mxu0 0.0
    %344 = vmatpush.xpose.msra.mxu0 0.0
    %345 = vmatpush.xpose.msra.mxu0 0.0
    %346 = vmatpush.xpose.msra.mxu0 0.0
    %347 = vmatpush.xpose.msra.mxu0 0.0
    %348 = vmatpush.xpose.msra.mxu0 0.0
    %349 = vmatpush.xpose.msra.mxu0 0.0
    %350 = vmatpush.xpose.msra.mxu0 0.0
    %351 = vmatpush.xpose.msra.mxu0 0.0
    %352 = vmatpush.xpose.msra.mxu0 0.0
    %353 = vmatpush.xpose.msra.mxu0 0.0
    %v354 = vand.u32 %v72, 4294901760
    %355 = vmatpush.xpose.msra.mxu0 %v354
    %v356 = vand.u32 %v69, 4294901760
    %357 = vmatpush.xpose.msra.mxu0 %v356
    %v358 = vand.u32 %v66, 4294901760
    %359 = vmatpush.xpose.msra.mxu0 %v358
    %v360 = vand.u32 %v63, 4294901760
    %361 = vmatpush.xpose.msra.mxu0 %v360
    %v362 = vand.u32 %v48, 4294901760
    %363 = vmatmul.f32.gmra.mxu0 %v362
    %v364 = vpop.f32.mrf.mxu0
    %v365 = vadd.f32 %v324, %v364
    %v366 = vand.u32 %v51, 4294901760
    %367 = vmatmul.f32.gmra.mxu0 %v366
    %v368 = vpop.f32.mrf.mxu0
    %v369 = vadd.f32 %v328, %v368
    %v370 = vand.u32 %v54, 4294901760
    %371 = vmatmul.f32.gmra.mxu0 %v370
    %v372 = vpop.f32.mrf.mxu0
    %v373 = vadd.f32 %v332, %v372
    %v374 = vand.u32 %v57, 4294901760
    %375 = vmatmul.f32.gmra.mxu0 %v374
    %v376 = vpop.f32.mrf.mxu0
    %v377 = vadd.f32 %v336, %v376
    %v378 = vand.u32 %v60, 4294901760
    %379 = vmatmul.f32.gmra.mxu0 %v378
    %v380 = vpop.f32.mrf.mxu0
    %v381 = vadd.f32 %v340, %v380
    %382 = vdwg.mxu0
    %vm383 = vcmask 261120
    %v385 = vsel %vm383, %v365, 0
    %v388 = vsel %vm383, %v369, 0
    %v391 = vsel %vm383, %v373, 0
    %v394 = vsel %vm383, %v377, 0
    %v397 = vsel %vm383, %v381, 0
    %v400 = vsel %vm383, %v28, 0
    %402 = vmatpush.xpose.msra.mxu0 0.0
    %403 = vmatpush.xpose.msra.mxu0 0.0
    %404 = vmatpush.xpose.msra.mxu0 0.0
    %405 = vmatpush.xpose.msra.mxu0 0.0
    %406 = vmatpush.xpose.msra.mxu0 0.0
    %407 = vmatpush.xpose.msra.mxu0 0.0
    %408 = vmatpush.xpose.msra.mxu0 0.0
    %409 = vmatpush.xpose.msra.mxu0 0.0
    %410 = vmatpush.xpose.msra.mxu0 0.0
    %411 = vmatpush.xpose.msra.mxu0 0.0
    %412 = vmatpush.xpose.msra.mxu0 0.0
    %413 = vmatpush.xpose.msra.mxu0 0.0
    %414 = vmatpush.xpose.msra.mxu0 0.0
    %415 = vmatpush.xpose.msra.mxu0 0.0
    %416 = vmatpush.xpose.msra.mxu0 0.0
    %v417 = vand.u32 %v400, 4294901760
    %418 = vmatpush.xpose.msra.mxu0 %v417
    %v419 = vand.u32 %v385, 4294901760
    %v420 = vsub.f32 %v385, %v419
    %v421 = vand.u32 %v420, 4294901760
    %v422 = vsub.f32 %v420, %v421
    %v423 = vand.u32 %v422, 4294901760
    %424 = vmatmul.f32.gmra.mxu0 %v423
    %v425 = vpop.f32.mrf.mxu0
    %v426 = vand.u32 %v388, 4294901760
    %v427 = vsub.f32 %v388, %v426
    %v428 = vand.u32 %v427, 4294901760
    %v429 = vsub.f32 %v427, %v428
    %v430 = vand.u32 %v429, 4294901760
    %431 = vmatmul.f32.gmra.mxu0 %v430
    %v432 = vpop.f32.mrf.mxu0
    %v433 = vadd.f32 0.0, %v432
    %v434 = vand.u32 %v391, 4294901760
    %v435 = vsub.f32 %v391, %v434
    %v436 = vand.u32 %v435, 4294901760
    %v437 = vsub.f32 %v435, %v436
    %v438 = vand.u32 %v437, 4294901760
    %439 = vmatmul.f32.gmra.mxu0 %v438
    %v440 = vpop.f32.mrf.mxu0
    %v441 = vadd.f32 0.0, %v440
    %v442 = vand.u32 %v394, 4294901760
    %v443 = vsub.f32 %v394, %v442
    %v444 = vand.u32 %v443, 4294901760
    %v445 = vsub.f32 %v443, %v444
    %v446 = vand.u32 %v445, 4294901760
    %447 = vmatmul.f32.gmra.mxu0 %v446
    %v448 = vpop.f32.mrf.mxu0
    %v449 = vadd.f32 0.0, %v448
    %v450 = vand.u32 %v397, 4294901760
    %v451 = vsub.f32 %v397, %v450
    %v452 = vand.u32 %v451, 4294901760
    %v453 = vsub.f32 %v451, %v452
    %v454 = vand.u32 %v453, 4294901760
    %455 = vmatmul.f32.gmra.mxu0 %v454
    %v456 = vpop.f32.mrf.mxu0
    %v457 = vadd.f32 0.0, %v456
    %458 = vdwg.mxu0
    %459 = vmatpush.xpose.msra.mxu0 0.0
    %460 = vmatpush.xpose.msra.mxu0 0.0
    %461 = vmatpush.xpose.msra.mxu0 0.0
    %462 = vmatpush.xpose.msra.mxu0 0.0
    %463 = vmatpush.xpose.msra.mxu0 0.0
    %464 = vmatpush.xpose.msra.mxu0 0.0
    %465 = vmatpush.xpose.msra.mxu0 0.0
    %466 = vmatpush.xpose.msra.mxu0 0.0
    %467 = vmatpush.xpose.msra.mxu0 0.0
    %468 = vmatpush.xpose.msra.mxu0 0.0
    %469 = vmatpush.xpose.msra.mxu0 0.0
    %470 = vmatpush.xpose.msra.mxu0 0.0
    %471 = vmatpush.xpose.msra.mxu0 0.0
    %472 = vmatpush.xpose.msra.mxu0 0.0
    %473 = vmatpush.xpose.msra.mxu0 0.0
    %v474 = vand.u32 %v400, 4294901760
    %v475 = vsub.f32 %v400, %v474
    %v476 = vand.u32 %v475, 4294901760
    %v477 = vsub.f32 %v475, %v476
    %v478 = vand.u32 %v477, 4294901760
    %479 = vmatpush.xpose.msra.mxu0 %v478
    %v480 = vand.u32 %v385, 4294901760
    %481 = vmatmul.f32.gmra.mxu0 %v480
    %v482 = vpop.f32.mrf.mxu0
    %v483 = vand.u32 %v388, 4294901760
    %484 = vmatmul.f32.gmra.mxu0 %v483
    %v485 = vpop.f32.mrf.mxu0
    %v486 = vadd.f32 %v433, %v485
    %v487 = vand.u32 %v391, 4294901760
    %488 = vmatmul.f32.gmra.mxu0 %v487
    %v489 = vpop.f32.mrf.mxu0
    %v490 = vadd.f32 %v441, %v489
    %v491 = vand.u32 %v394, 4294901760
    %492 = vmatmul.f32.gmra.mxu0 %v491
    %v493 = vpop.f32.mrf.mxu0
    %v494 = vadd.f32 %v449, %v493
    %v495 = vand.u32 %v397, 4294901760
    %496 = vmatmul.f32.gmra.mxu0 %v495
    %v497 = vpop.f32.mrf.mxu0
    %v498 = vadd.f32 %v457, %v497
    %499 = vdwg.mxu0
    %500 = vmatpush.xpose.msra.mxu0 0.0
    %501 = vmatpush.xpose.msra.mxu0 0.0
    %502 = vmatpush.xpose.msra.mxu0 0.0
    %503 = vmatpush.xpose.msra.mxu0 0.0
    %504 = vmatpush.xpose.msra.mxu0 0.0
    %505 = vmatpush.xpose.msra.mxu0 0.0
    %506 = vmatpush.xpose.msra.mxu0 0.0
    %507 = vmatpush.xpose.msra.mxu0 0.0
    %508 = vmatpush.xpose.msra.mxu0 0.0
    %509 = vmatpush.xpose.msra.mxu0 0.0
    %510 = vmatpush.xpose.msra.mxu0 0.0
    %511 = vmatpush.xpose.msra.mxu0 0.0
    %512 = vmatpush.xpose.msra.mxu0 0.0
    %513 = vmatpush.xpose.msra.mxu0 0.0
    %514 = vmatpush.xpose.msra.mxu0 0.0
    %v515 = vand.u32 %v400, 4294901760
    %v516 = vsub.f32 %v400, %v515
    %517 = vmatpush.xpose.msra.mxu0 %v516
    %v518 = vand.u32 %v385, 4294901760
    %v519 = vsub.f32 %v385, %v518
    %520 = vmatmul.f32.gmra.mxu0 %v519
    %v521 = vpop.f32.mrf.mxu0
    %v522 = vand.u32 %v388, 4294901760
    %v523 = vsub.f32 %v388, %v522
    %524 = vmatmul.f32.gmra.mxu0 %v523
    %v525 = vpop.f32.mrf.mxu0
    %v526 = vadd.f32 %v486, %v525
    %v527 = vand.u32 %v391, 4294901760
    %v528 = vsub.f32 %v391, %v527
    %529 = vmatmul.f32.gmra.mxu0 %v528
    %v530 = vpop.f32.mrf.mxu0
    %v531 = vadd.f32 %v490, %v530
    %v532 = vand.u32 %v394, 4294901760
    %v533 = vsub.f32 %v394, %v532
    %534 = vmatmul.f32.gmra.mxu0 %v533
    %v535 = vpop.f32.mrf.mxu0
    %v536 = vadd.f32 %v494, %v535
    %v537 = vand.u32 %v397, 4294901760
    %v538 = vsub.f32 %v397, %v537
    %539 = vmatmul.f32.gmra.mxu0 %v538
    %v540 = vpop.f32.mrf.mxu0
    %v541 = vadd.f32 %v498, %v540
    %542 = vdwg.mxu0
    %543 = vmatpush.xpose.msra.mxu0 0.0
    %544 = vmatpush.xpose.msra.mxu0 0.0
    %545 = vmatpush.xpose.msra.mxu0 0.0
    %546 = vmatpush.xpose.msra.mxu0 0.0
    %547 = vmatpush.xpose.msra.mxu0 0.0
    %548 = vmatpush.xpose.msra.mxu0 0.0
    %549 = vmatpush.xpose.msra.mxu0 0.0
    %550 = vmatpush.xpose.msra.mxu0 0.0
    %551 = vmatpush.xpose.msra.mxu0 0.0
    %552 = vmatpush.xpose.msra.mxu0 0.0
    %553 = vmatpush.xpose.msra.mxu0 0.0
    %554 = vmatpush.xpose.msra.mxu0 0.0
    %555 = vmatpush.xpose.msra.mxu0 0.0
    %556 = vmatpush.xpose.msra.mxu0 0.0
    %557 = vmatpush.xpose.msra.mxu0 0.0
    %v558 = vand.u32 %v400, 4294901760
    %559 = vmatpush.xpose.msra.mxu0 %v558
    %v560 = vand.u32 %v385, 4294901760
    %v561 = vsub.f32 %v385, %v560
    %v562 = vand.u32 %v561, 4294901760
    %563 = vmatmul.f32.gmra.mxu0 %v562
    %v564 = vpop.f32.mrf.mxu0
    %v565 = vand.u32 %v388, 4294901760
    %v566 = vsub.f32 %v388, %v565
    %v567 = vand.u32 %v566, 4294901760
    %568 = vmatmul.f32.gmra.mxu0 %v567
    %v569 = vpop.f32.mrf.mxu0
    %v570 = vadd.f32 %v526, %v569
    %v571 = vand.u32 %v391, 4294901760
    %v572 = vsub.f32 %v391, %v571
    %v573 = vand.u32 %v572, 4294901760
    %574 = vmatmul.f32.gmra.mxu0 %v573
    %v575 = vpop.f32.mrf.mxu0
    %v576 = vadd.f32 %v531, %v575
    %v577 = vand.u32 %v394, 4294901760
    %v578 = vsub.f32 %v394, %v577
    %v579 = vand.u32 %v578, 4294901760
    %580 = vmatmul.f32.gmra.mxu0 %v579
    %v581 = vpop.f32.mrf.mxu0
    %v582 = vadd.f32 %v536, %v581
    %v583 = vand.u32 %v397, 4294901760
    %v584 = vsub.f32 %v397, %v583
    %v585 = vand.u32 %v584, 4294901760
    %586 = vmatmul.f32.gmra.mxu0 %v585
    %v587 = vpop.f32.mrf.mxu0
    %v588 = vadd.f32 %v541, %v587
    %589 = vdwg.mxu0
    %590 = vmatpush.xpose.msra.mxu0 0.0
    %591 = vmatpush.xpose.msra.mxu0 0.0
    %592 = vmatpush.xpose.msra.mxu0 0.0
    %593 = vmatpush.xpose.msra.mxu0 0.0
    %594 = vmatpush.xpose.msra.mxu0 0.0
    %595 = vmatpush.xpose.msra.mxu0 0.0
    %596 = vmatpush.xpose.msra.mxu0 0.0
    %597 = vmatpush.xpose.msra.mxu0 0.0
    %598 = vmatpush.xpose.msra.mxu0 0.0
    %599 = vmatpush.xpose.msra.mxu0 0.0
    %600 = vmatpush.xpose.msra.mxu0 0.0
    %601 = vmatpush.xpose.msra.mxu0 0.0
    %602 = vmatpush.xpose.msra.mxu0 0.0
    %603 = vmatpush.xpose.msra.mxu0 0.0
    %604 = vmatpush.xpose.msra.mxu0 0.0
    %v605 = vand.u32 %v400, 4294901760
    %v606 = vsub.f32 %v400, %v605
    %v607 = vand.u32 %v606, 4294901760
    %608 = vmatpush.xpose.msra.mxu0 %v607
    %v609 = vand.u32 %v385, 4294901760
    %610 = vmatmul.f32.gmra.mxu0 %v609
    %v611 = vpop.f32.mrf.mxu0
    %v612 = vand.u32 %v388, 4294901760
    %613 = vmatmul.f32.gmra.mxu0 %v612
    %v614 = vpop.f32.mrf.mxu0
    %v615 = vadd.f32 %v570, %v614
    %v616 = vand.u32 %v391, 4294901760
    %617 = vmatmul.f32.gmra.mxu0 %v616
    %v618 = vpop.f32.mrf.mxu0
    %v619 = vadd.f32 %v576, %v618
    %v620 = vand.u32 %v394, 4294901760
    %621 = vmatmul.f32.gmra.mxu0 %v620
    %v622 = vpop.f32.mrf.mxu0
    %v623 = vadd.f32 %v582, %v622
    %v624 = vand.u32 %v397, 4294901760
    %625 = vmatmul.f32.gmra.mxu0 %v624
    %v626 = vpop.f32.mrf.mxu0
    %v627 = vadd.f32 %v588, %v626
    %628 = vdwg.mxu0
    %629 = vmatpush.xpose.msra.mxu0 0.0
    %630 = vmatpush.xpose.msra.mxu0 0.0
    %631 = vmatpush.xpose.msra.mxu0 0.0
    %632 = vmatpush.xpose.msra.mxu0 0.0
    %633 = vmatpush.xpose.msra.mxu0 0.0
    %634 = vmatpush.xpose.msra.mxu0 0.0
    %635 = vmatpush.xpose.msra.mxu0 0.0
    %636 = vmatpush.xpose.msra.mxu0 0.0
    %637 = vmatpush.xpose.msra.mxu0 0.0
    %638 = vmatpush.xpose.msra.mxu0 0.0
    %639 = vmatpush.xpose.msra.mxu0 0.0
    %640 = vmatpush.xpose.msra.mxu0 0.0
    %641 = vmatpush.xpose.msra.mxu0 0.0
    %642 = vmatpush.xpose.msra.mxu0 0.0
    %643 = vmatpush.xpose.msra.mxu0 0.0
    %v644 = vand.u32 %v400, 4294901760
    %645 = vmatpush.xpose.msra.mxu0 %v644
    %v646 = vand.u32 %v385, 4294901760
    %647 = vmatmul.f32.gmra.mxu0 %v646
    %v648 = vpop.f32.mrf.mxu0
    %v649 = vand.u32 %v388, 4294901760
    %650 = vmatmul.f32.gmra.mxu0 %v649
    %v651 = vpop.f32.mrf.mxu0
    %v652 = vadd.f32 %v615, %v651
    %v653 = vand.u32 %v391, 4294901760
    %654 = vmatmul.f32.gmra.mxu0 %v653
    %v655 = vpop.f32.mrf.mxu0
    %v656 = vadd.f32 %v619, %v655
    %v657 = vand.u32 %v394, 4294901760
    %658 = vmatmul.f32.gmra.mxu0 %v657
    %v659 = vpop.f32.mrf.mxu0
    %v660 = vadd.f32 %v623, %v659
    %v661 = vand.u32 %v397, 4294901760
    %662 = vmatmul.f32.gmra.mxu0 %v661
    %v663 = vpop.f32.mrf.mxu0
    %v664 = vadd.f32 %v627, %v663
    %665 = vdwg.mxu0
    %v667 = vsel %vm46, %v42, 0
    %v670 = vsel %vm46, %v43, 0
    %v673 = vsel %vm46, %v44, 0
    %v676 = vsel %vm46, %v45, 0
    %v679 = vsel %vm46, %v33, 0
    %v682 = vsel %vm46, %v34, 0
    %v685 = vsel %vm46, %v35, 0
    %v688 = vsel %vm46, %v36, 0
    %690 = vmatpush.xpose.msra.mxu0 0.0
    %691 = vmatpush.xpose.msra.mxu0 0.0
    %692 = vmatpush.xpose.msra.mxu0 0.0
    %693 = vmatpush.xpose.msra.mxu0 0.0
    %694 = vmatpush.xpose.msra.mxu0 0.0
    %695 = vmatpush.xpose.msra.mxu0 0.0
    %696 = vmatpush.xpose.msra.mxu0 0.0
    %697 = vmatpush.xpose.msra.mxu0 0.0
    %698 = vmatpush.xpose.msra.mxu0 0.0
    %699 = vmatpush.xpose.msra.mxu0 0.0
    %700 = vmatpush.xpose.msra.mxu0 0.0
    %701 = vmatpush.xpose.msra.mxu0 0.0
    %v702 = vand.u32 %v688, 4294901760
    %703 = vmatpush.xpose.msra.mxu0 %v702
    %v704 = vand.u32 %v685, 4294901760
    %705 = vmatpush.xpose.msra.mxu0 %v704
    %v706 = vand.u32 %v682, 4294901760
    %707 = vmatpush.xpose.msra.mxu0 %v706
    %v708 = vand.u32 %v679, 4294901760
    %709 = vmatpush.xpose.msra.mxu0 %v708
    %v710 = vand.u32 %v667, 4294901760
    %v711 = vsub.f32 %v667, %v710
    %v712 = vand.u32 %v711, 4294901760
    %v713 = vsub.f32 %v711, %v712
    %v714 = vand.u32 %v713, 4294901760
    %715 = vmatmul.f32.gmra.mxu0 %v714
    %v716 = vpop.f32.mrf.mxu0
    %v717 = vadd.f32 0.0, %v716
    %v718 = vand.u32 %v670, 4294901760
    %v719 = vsub.f32 %v670, %v718
    %v720 = vand.u32 %v719, 4294901760
    %v721 = vsub.f32 %v719, %v720
    %v722 = vand.u32 %v721, 4294901760
    %723 = vmatmul.f32.gmra.mxu0 %v722
    %v724 = vpop.f32.mrf.mxu0
    %v725 = vadd.f32 0.0, %v724
    %v726 = vand.u32 %v673, 4294901760
    %v727 = vsub.f32 %v673, %v726
    %v728 = vand.u32 %v727, 4294901760
    %v729 = vsub.f32 %v727, %v728
    %v730 = vand.u32 %v729, 4294901760
    %731 = vmatmul.f32.gmra.mxu0 %v730
    %v732 = vpop.f32.mrf.mxu0
    %v733 = vadd.f32 0.0, %v732
    %v734 = vand.u32 %v676, 4294901760
    %v735 = vsub.f32 %v676, %v734
    %v736 = vand.u32 %v735, 4294901760
    %v737 = vsub.f32 %v735, %v736
    %v738 = vand.u32 %v737, 4294901760
    %739 = vmatmul.f32.gmra.mxu0 %v738
    %v740 = vpop.f32.mrf.mxu0
    %v741 = vadd.f32 0.0, %v740
    %742 = vdwg.mxu0
    %743 = vmatpush.xpose.msra.mxu0 0.0
    %744 = vmatpush.xpose.msra.mxu0 0.0
    %745 = vmatpush.xpose.msra.mxu0 0.0
    %746 = vmatpush.xpose.msra.mxu0 0.0
    %747 = vmatpush.xpose.msra.mxu0 0.0
    %748 = vmatpush.xpose.msra.mxu0 0.0
    %749 = vmatpush.xpose.msra.mxu0 0.0
    %750 = vmatpush.xpose.msra.mxu0 0.0
    %751 = vmatpush.xpose.msra.mxu0 0.0
    %752 = vmatpush.xpose.msra.mxu0 0.0
    %753 = vmatpush.xpose.msra.mxu0 0.0
    %754 = vmatpush.xpose.msra.mxu0 0.0
    %v755 = vand.u32 %v688, 4294901760
    %v756 = vsub.f32 %v688, %v755
    %v757 = vand.u32 %v756, 4294901760
    %v758 = vsub.f32 %v756, %v757
    %v759 = vand.u32 %v758, 4294901760
    %760 = vmatpush.xpose.msra.mxu0 %v759
    %v761 = vand.u32 %v685, 4294901760
    %v762 = vsub.f32 %v685, %v761
    %v763 = vand.u32 %v762, 4294901760
    %v764 = vsub.f32 %v762, %v763
    %v765 = vand.u32 %v764, 4294901760
    %766 = vmatpush.xpose.msra.mxu0 %v765
    %v767 = vand.u32 %v682, 4294901760
    %v768 = vsub.f32 %v682, %v767
    %v769 = vand.u32 %v768, 4294901760
    %v770 = vsub.f32 %v768, %v769
    %v771 = vand.u32 %v770, 4294901760
    %772 = vmatpush.xpose.msra.mxu0 %v771
    %v773 = vand.u32 %v679, 4294901760
    %v774 = vsub.f32 %v679, %v773
    %v775 = vand.u32 %v774, 4294901760
    %v776 = vsub.f32 %v774, %v775
    %v777 = vand.u32 %v776, 4294901760
    %778 = vmatpush.xpose.msra.mxu0 %v777
    %v779 = vand.u32 %v667, 4294901760
    %780 = vmatmul.f32.gmra.mxu0 %v779
    %v781 = vpop.f32.mrf.mxu0
    %v782 = vadd.f32 %v717, %v781
    %v783 = vand.u32 %v670, 4294901760
    %784 = vmatmul.f32.gmra.mxu0 %v783
    %v785 = vpop.f32.mrf.mxu0
    %v786 = vadd.f32 %v725, %v785
    %v787 = vand.u32 %v673, 4294901760
    %788 = vmatmul.f32.gmra.mxu0 %v787
    %v789 = vpop.f32.mrf.mxu0
    %v790 = vadd.f32 %v733, %v789
    %v791 = vand.u32 %v676, 4294901760
    %792 = vmatmul.f32.gmra.mxu0 %v791
    %v793 = vpop.f32.mrf.mxu0
    %v794 = vadd.f32 %v741, %v793
    %795 = vdwg.mxu0
    %796 = vmatpush.xpose.msra.mxu0 0.0
    %797 = vmatpush.xpose.msra.mxu0 0.0
    %798 = vmatpush.xpose.msra.mxu0 0.0
    %799 = vmatpush.xpose.msra.mxu0 0.0
    %800 = vmatpush.xpose.msra.mxu0 0.0
    %801 = vmatpush.xpose.msra.mxu0 0.0
    %802 = vmatpush.xpose.msra.mxu0 0.0
    %803 = vmatpush.xpose.msra.mxu0 0.0
    %804 = vmatpush.xpose.msra.mxu0 0.0
    %805 = vmatpush.xpose.msra.mxu0 0.0
    %806 = vmatpush.xpose.msra.mxu0 0.0
    %807 = vmatpush.xpose.msra.mxu0 0.0
    %v808 = vand.u32 %v688, 4294901760
    %v809 = vsub.f32 %v688, %v808
    %810 = vmatpush.xpose.msra.mxu0 %v809
    %v811 = vand.u32 %v685, 4294901760
    %v812 = vsub.f32 %v685, %v811
    %813 = vmatpush.xpose.msra.mxu0 %v812
    %v814 = vand.u32 %v682, 4294901760
    %v815 = vsub.f32 %v682, %v814
    %816 = vmatpush.xpose.msra.mxu0 %v815
    %v817 = vand.u32 %v679, 4294901760
    %v818 = vsub.f32 %v679, %v817
    %819 = vmatpush.xpose.msra.mxu0 %v818
    %v820 = vand.u32 %v667, 4294901760
    %v821 = vsub.f32 %v667, %v820
    %822 = vmatmul.f32.gmra.mxu0 %v821
    %v823 = vpop.f32.mrf.mxu0
    %v824 = vadd.f32 %v782, %v823
    %v825 = vand.u32 %v670, 4294901760
    %v826 = vsub.f32 %v670, %v825
    %827 = vmatmul.f32.gmra.mxu0 %v826
    %v828 = vpop.f32.mrf.mxu0
    %v829 = vadd.f32 %v786, %v828
    %v830 = vand.u32 %v673, 4294901760
    %v831 = vsub.f32 %v673, %v830
    %832 = vmatmul.f32.gmra.mxu0 %v831
    %v833 = vpop.f32.mrf.mxu0
    %v834 = vadd.f32 %v790, %v833
    %v835 = vand.u32 %v676, 4294901760
    %v836 = vsub.f32 %v676, %v835
    %837 = vmatmul.f32.gmra.mxu0 %v836
    %v838 = vpop.f32.mrf.mxu0
    %v839 = vadd.f32 %v794, %v838
    %840 = vdwg.mxu0
    %841 = vmatpush.xpose.msra.mxu0 0.0
    %842 = vmatpush.xpose.msra.mxu0 0.0
    %843 = vmatpush.xpose.msra.mxu0 0.0
    %844 = vmatpush.xpose.msra.mxu0 0.0
    %845 = vmatpush.xpose.msra.mxu0 0.0
    %846 = vmatpush.xpose.msra.mxu0 0.0
    %847 = vmatpush.xpose.msra.mxu0 0.0
    %848 = vmatpush.xpose.msra.mxu0 0.0
    %849 = vmatpush.xpose.msra.mxu0 0.0
    %850 = vmatpush.xpose.msra.mxu0 0.0
    %851 = vmatpush.xpose.msra.mxu0 0.0
    %852 = vmatpush.xpose.msra.mxu0 0.0
    %v853 = vand.u32 %v688, 4294901760
    %854 = vmatpush.xpose.msra.mxu0 %v853
    %v855 = vand.u32 %v685, 4294901760
    %856 = vmatpush.xpose.msra.mxu0 %v855
    %v857 = vand.u32 %v682, 4294901760
    %858 = vmatpush.xpose.msra.mxu0 %v857
    %v859 = vand.u32 %v679, 4294901760
    %860 = vmatpush.xpose.msra.mxu0 %v859
    %v861 = vand.u32 %v667, 4294901760
    %v862 = vsub.f32 %v667, %v861
    %v863 = vand.u32 %v862, 4294901760
    %864 = vmatmul.f32.gmra.mxu0 %v863
    %v865 = vpop.f32.mrf.mxu0
    %v866 = vadd.f32 %v824, %v865
    %v867 = vand.u32 %v670, 4294901760
    %v868 = vsub.f32 %v670, %v867
    %v869 = vand.u32 %v868, 4294901760
    %870 = vmatmul.f32.gmra.mxu0 %v869
    %v871 = vpop.f32.mrf.mxu0
    %v872 = vadd.f32 %v829, %v871
    %v873 = vand.u32 %v673, 4294901760
    %v874 = vsub.f32 %v673, %v873
    %v875 = vand.u32 %v874, 4294901760
    %876 = vmatmul.f32.gmra.mxu0 %v875
    %v877 = vpop.f32.mrf.mxu0
    %v878 = vadd.f32 %v834, %v877
    %v879 = vand.u32 %v676, 4294901760
    %v880 = vsub.f32 %v676, %v879
    %v881 = vand.u32 %v880, 4294901760
    %882 = vmatmul.f32.gmra.mxu0 %v881
    %v883 = vpop.f32.mrf.mxu0
    %v884 = vadd.f32 %v839, %v883
    %885 = vdwg.mxu0
    %886 = vmatpush.xpose.msra.mxu0 0.0
    %887 = vmatpush.xpose.msra.mxu0 0.0
    %888 = vmatpush.xpose.msra.mxu0 0.0
    %889 = vmatpush.xpose.msra.mxu0 0.0
    %890 = vmatpush.xpose.msra.mxu0 0.0
    %891 = vmatpush.xpose.msra.mxu0 0.0
    %892 = vmatpush.xpose.msra.mxu0 0.0
    %893 = vmatpush.xpose.msra.mxu0 0.0
    %894 = vmatpush.xpose.msra.mxu0 0.0
    %895 = vmatpush.xpose.msra.mxu0 0.0
    %896 = vmatpush.xpose.msra.mxu0 0.0
    %897 = vmatpush.xpose.msra.mxu0 0.0
    %v898 = vand.u32 %v688, 4294901760
    %v899 = vsub.f32 %v688, %v898
    %v900 = vand.u32 %v899, 4294901760
    %901 = vmatpush.xpose.msra.mxu0 %v900
    %v902 = vand.u32 %v685, 4294901760
    %v903 = vsub.f32 %v685, %v902
    %v904 = vand.u32 %v903, 4294901760
    %905 = vmatpush.xpose.msra.mxu0 %v904
    %v906 = vand.u32 %v682, 4294901760
    %v907 = vsub.f32 %v682, %v906
    %v908 = vand.u32 %v907, 4294901760
    %909 = vmatpush.xpose.msra.mxu0 %v908
    %v910 = vand.u32 %v679, 4294901760
    %v911 = vsub.f32 %v679, %v910
    %v912 = vand.u32 %v911, 4294901760
    %913 = vmatpush.xpose.msra.mxu0 %v912
    %v914 = vand.u32 %v667, 4294901760
    %915 = vmatmul.f32.gmra.mxu0 %v914
    %v916 = vpop.f32.mrf.mxu0
    %v917 = vadd.f32 %v866, %v916
    %v918 = vand.u32 %v670, 4294901760
    %919 = vmatmul.f32.gmra.mxu0 %v918
    %v920 = vpop.f32.mrf.mxu0
    %v921 = vadd.f32 %v872, %v920
    %v922 = vand.u32 %v673, 4294901760
    %923 = vmatmul.f32.gmra.mxu0 %v922
    %v924 = vpop.f32.mrf.mxu0
    %v925 = vadd.f32 %v878, %v924
    %v926 = vand.u32 %v676, 4294901760
    %927 = vmatmul.f32.gmra.mxu0 %v926
    %v928 = vpop.f32.mrf.mxu0
    %v929 = vadd.f32 %v884, %v928
    %930 = vdwg.mxu0
    %931 = vmatpush.xpose.msra.mxu0 0.0
    %932 = vmatpush.xpose.msra.mxu0 0.0
    %933 = vmatpush.xpose.msra.mxu0 0.0
    %934 = vmatpush.xpose.msra.mxu0 0.0
    %935 = vmatpush.xpose.msra.mxu0 0.0
    %936 = vmatpush.xpose.msra.mxu0 0.0
    %937 = vmatpush.xpose.msra.mxu0 0.0
    %938 = vmatpush.xpose.msra.mxu0 0.0
    %939 = vmatpush.xpose.msra.mxu0 0.0
    %940 = vmatpush.xpose.msra.mxu0 0.0
    %941 = vmatpush.xpose.msra.mxu0 0.0
    %942 = vmatpush.xpose.msra.mxu0 0.0
    %v943 = vand.u32 %v688, 4294901760
    %944 = vmatpush.xpose.msra.mxu0 %v943
    %v945 = vand.u32 %v685, 4294901760
    %946 = vmatpush.xpose.msra.mxu0 %v945
    %v947 = vand.u32 %v682, 4294901760
    %948 = vmatpush.xpose.msra.mxu0 %v947
    %v949 = vand.u32 %v679, 4294901760
    %950 = vmatpush.xpose.msra.mxu0 %v949
    %v951 = vand.u32 %v667, 4294901760
    %952 = vmatmul.f32.gmra.mxu0 %v951
    %v953 = vpop.f32.mrf.mxu0
    %v954 = vadd.f32 %v917, %v953
    %v955 = vand.u32 %v670, 4294901760
    %956 = vmatmul.f32.gmra.mxu0 %v955
    %v957 = vpop.f32.mrf.mxu0
    %v958 = vadd.f32 %v921, %v957
    %v959 = vand.u32 %v673, 4294901760
    %960 = vmatmul.f32.gmra.mxu0 %v959
    %v961 = vpop.f32.mrf.mxu0
    %v962 = vadd.f32 %v925, %v961
    %v963 = vand.u32 %v676, 4294901760
    %964 = vmatmul.f32.gmra.mxu0 %v963
    %v965 = vpop.f32.mrf.mxu0
    %v966 = vadd.f32 %v929, %v965
    %967 = vdwg.mxu0
    %v969 = vsel %vm383, %v29, 0
    %v972 = vsel %vm383, %v30, 0
    %v975 = vsel %vm383, %v31, 0
    %v978 = vsel %vm383, %v32, 0
    %980 = vmatpush.xpose.msra.mxu0 0.0
    %981 = vmatpush.xpose.msra.mxu0 0.0
    %982 = vmatpush.xpose.msra.mxu0 0.0
    %983 = vmatpush.xpose.msra.mxu0 0.0
    %984 = vmatpush.xpose.msra.mxu0 0.0
    %985 = vmatpush.xpose.msra.mxu0 0.0
    %986 = vmatpush.xpose.msra.mxu0 0.0
    %987 = vmatpush.xpose.msra.mxu0 0.0
    %988 = vmatpush.xpose.msra.mxu0 0.0
    %989 = vmatpush.xpose.msra.mxu0 0.0
    %990 = vmatpush.xpose.msra.mxu0 0.0
    %991 = vmatpush.xpose.msra.mxu0 0.0
    %v992 = vand.u32 %v978, 4294901760
    %993 = vmatpush.xpose.msra.mxu0 %v992
    %v994 = vand.u32 %v975, 4294901760
    %995 = vmatpush.xpose.msra.mxu0 %v994
    %v996 = vand.u32 %v972, 4294901760
    %997 = vmatpush.xpose.msra.mxu0 %v996
    %v998 = vand.u32 %v969, 4294901760
    %999 = vmatpush.xpose.msra.mxu0 %v998
    %v1000 = vand.u32 %v385, 4294901760
    %v1001 = vsub.f32 %v385, %v1000
    %v1002 = vand.u32 %v1001, 4294901760
    %v1003 = vsub.f32 %v1001, %v1002
    %v1004 = vand.u32 %v1003, 4294901760
    %1005 = vmatmul.f32.gmra.mxu0 %v1004
    %v1006 = vpop.f32.mrf.mxu0
    %v1007 = vadd.f32 %v954, %v1006
    %1008 = vdwg.mxu0
    %1009 = vmatpush.xpose.msra.mxu0 0.0
    %1010 = vmatpush.xpose.msra.mxu0 0.0
    %1011 = vmatpush.xpose.msra.mxu0 0.0
    %1012 = vmatpush.xpose.msra.mxu0 0.0
    %1013 = vmatpush.xpose.msra.mxu0 0.0
    %1014 = vmatpush.xpose.msra.mxu0 0.0
    %1015 = vmatpush.xpose.msra.mxu0 0.0
    %1016 = vmatpush.xpose.msra.mxu0 0.0
    %1017 = vmatpush.xpose.msra.mxu0 0.0
    %1018 = vmatpush.xpose.msra.mxu0 0.0
    %1019 = vmatpush.xpose.msra.mxu0 0.0
    %1020 = vmatpush.xpose.msra.mxu0 0.0
    %v1021 = vand.u32 %v978, 4294901760
    %v1022 = vsub.f32 %v978, %v1021
    %v1023 = vand.u32 %v1022, 4294901760
    %v1024 = vsub.f32 %v1022, %v1023
    %v1025 = vand.u32 %v1024, 4294901760
    %1026 = vmatpush.xpose.msra.mxu0 %v1025
    %v1027 = vand.u32 %v975, 4294901760
    %v1028 = vsub.f32 %v975, %v1027
    %v1029 = vand.u32 %v1028, 4294901760
    %v1030 = vsub.f32 %v1028, %v1029
    %v1031 = vand.u32 %v1030, 4294901760
    %1032 = vmatpush.xpose.msra.mxu0 %v1031
    %v1033 = vand.u32 %v972, 4294901760
    %v1034 = vsub.f32 %v972, %v1033
    %v1035 = vand.u32 %v1034, 4294901760
    %v1036 = vsub.f32 %v1034, %v1035
    %v1037 = vand.u32 %v1036, 4294901760
    %1038 = vmatpush.xpose.msra.mxu0 %v1037
    %v1039 = vand.u32 %v969, 4294901760
    %v1040 = vsub.f32 %v969, %v1039
    %v1041 = vand.u32 %v1040, 4294901760
    %v1042 = vsub.f32 %v1040, %v1041
    %v1043 = vand.u32 %v1042, 4294901760
    %1044 = vmatpush.xpose.msra.mxu0 %v1043
    %v1045 = vand.u32 %v385, 4294901760
    %1046 = vmatmul.f32.gmra.mxu0 %v1045
    %v1047 = vpop.f32.mrf.mxu0
    %v1048 = vadd.f32 %v1007, %v1047
    %1049 = vdwg.mxu0
    %1050 = vmatpush.xpose.msra.mxu0 0.0
    %1051 = vmatpush.xpose.msra.mxu0 0.0
    %1052 = vmatpush.xpose.msra.mxu0 0.0
    %1053 = vmatpush.xpose.msra.mxu0 0.0
    %1054 = vmatpush.xpose.msra.mxu0 0.0
    %1055 = vmatpush.xpose.msra.mxu0 0.0
    %1056 = vmatpush.xpose.msra.mxu0 0.0
    %1057 = vmatpush.xpose.msra.mxu0 0.0
    %1058 = vmatpush.xpose.msra.mxu0 0.0
    %1059 = vmatpush.xpose.msra.mxu0 0.0
    %1060 = vmatpush.xpose.msra.mxu0 0.0
    %1061 = vmatpush.xpose.msra.mxu0 0.0
    %v1062 = vand.u32 %v978, 4294901760
    %v1063 = vsub.f32 %v978, %v1062
    %1064 = vmatpush.xpose.msra.mxu0 %v1063
    %v1065 = vand.u32 %v975, 4294901760
    %v1066 = vsub.f32 %v975, %v1065
    %1067 = vmatpush.xpose.msra.mxu0 %v1066
    %v1068 = vand.u32 %v972, 4294901760
    %v1069 = vsub.f32 %v972, %v1068
    %1070 = vmatpush.xpose.msra.mxu0 %v1069
    %v1071 = vand.u32 %v969, 4294901760
    %v1072 = vsub.f32 %v969, %v1071
    %1073 = vmatpush.xpose.msra.mxu0 %v1072
    %v1074 = vand.u32 %v385, 4294901760
    %v1075 = vsub.f32 %v385, %v1074
    %1076 = vmatmul.f32.gmra.mxu0 %v1075
    %v1077 = vpop.f32.mrf.mxu0
    %v1078 = vadd.f32 %v1048, %v1077
    %1079 = vdwg.mxu0
    %1080 = vmatpush.xpose.msra.mxu0 0.0
    %1081 = vmatpush.xpose.msra.mxu0 0.0
    %1082 = vmatpush.xpose.msra.mxu0 0.0
    %1083 = vmatpush.xpose.msra.mxu0 0.0
    %1084 = vmatpush.xpose.msra.mxu0 0.0
    %1085 = vmatpush.xpose.msra.mxu0 0.0
    %1086 = vmatpush.xpose.msra.mxu0 0.0
    %1087 = vmatpush.xpose.msra.mxu0 0.0
    %1088 = vmatpush.xpose.msra.mxu0 0.0
    %1089 = vmatpush.xpose.msra.mxu0 0.0
    %1090 = vmatpush.xpose.msra.mxu0 0.0
    %1091 = vmatpush.xpose.msra.mxu0 0.0
    %v1092 = vand.u32 %v978, 4294901760
    %1093 = vmatpush.xpose.msra.mxu0 %v1092
    %v1094 = vand.u32 %v975, 4294901760
    %1095 = vmatpush.xpose.msra.mxu0 %v1094
    %v1096 = vand.u32 %v972, 4294901760
    %1097 = vmatpush.xpose.msra.mxu0 %v1096
    %v1098 = vand.u32 %v969, 4294901760
    %1099 = vmatpush.xpose.msra.mxu0 %v1098
    %v1100 = vand.u32 %v385, 4294901760
    %v1101 = vsub.f32 %v385, %v1100
    %v1102 = vand.u32 %v1101, 4294901760
    %1103 = vmatmul.f32.gmra.mxu0 %v1102
    %v1104 = vpop.f32.mrf.mxu0
    %v1105 = vadd.f32 %v1078, %v1104
    %1106 = vdwg.mxu0
    %1107 = vmatpush.xpose.msra.mxu0 0.0
    %1108 = vmatpush.xpose.msra.mxu0 0.0
    %1109 = vmatpush.xpose.msra.mxu0 0.0
    %1110 = vmatpush.xpose.msra.mxu0 0.0
    %1111 = vmatpush.xpose.msra.mxu0 0.0
    %1112 = vmatpush.xpose.msra.mxu0 0.0
    %1113 = vmatpush.xpose.msra.mxu0 0.0
    %1114 = vmatpush.xpose.msra.mxu0 0.0
    %1115 = vmatpush.xpose.msra.mxu0 0.0
    %1116 = vmatpush.xpose.msra.mxu0 0.0
    %1117 = vmatpush.xpose.msra.mxu0 0.0
    %1118 = vmatpush.xpose.msra.mxu0 0.0
    %v1119 = vand.u32 %v978, 4294901760
    %v1120 = vsub.f32 %v978, %v1119
    %v1121 = vand.u32 %v1120, 4294901760
    %1122 = vmatpush.xpose.msra.mxu0 %v1121
    %v1123 = vand.u32 %v975, 4294901760
    %v1124 = vsub.f32 %v975, %v1123
    %v1125 = vand.u32 %v1124, 4294901760
    %1126 = vmatpush.xpose.msra.mxu0 %v1125
    %v1127 = vand.u32 %v972, 4294901760
    %v1128 = vsub.f32 %v972, %v1127
    %v1129 = vand.u32 %v1128, 4294901760
    %1130 = vmatpush.xpose.msra.mxu0 %v1129
    %v1131 = vand.u32 %v969, 4294901760
    %v1132 = vsub.f32 %v969, %v1131
    %v1133 = vand.u32 %v1132, 4294901760
    %1134 = vmatpush.xpose.msra.mxu0 %v1133
    %v1135 = vand.u32 %v385, 4294901760
    %1136 = vmatmul.f32.gmra.mxu0 %v1135
    %v1137 = vpop.f32.mrf.mxu0
    %v1138 = vadd.f32 %v1105, %v1137
    %1139 = vdwg.mxu0
    %1140 = vmatpush.xpose.msra.mxu0 0.0
    %1141 = vmatpush.xpose.msra.mxu0 0.0
    %1142 = vmatpush.xpose.msra.mxu0 0.0
    %1143 = vmatpush.xpose.msra.mxu0 0.0
    %1144 = vmatpush.xpose.msra.mxu0 0.0
    %1145 = vmatpush.xpose.msra.mxu0 0.0
    %1146 = vmatpush.xpose.msra.mxu0 0.0
    %1147 = vmatpush.xpose.msra.mxu0 0.0
    %1148 = vmatpush.xpose.msra.mxu0 0.0
    %1149 = vmatpush.xpose.msra.mxu0 0.0
    %1150 = vmatpush.xpose.msra.mxu0 0.0
    %1151 = vmatpush.xpose.msra.mxu0 0.0
    %v1152 = vand.u32 %v978, 4294901760
    %1153 = vmatpush.xpose.msra.mxu0 %v1152
    %v1154 = vand.u32 %v975, 4294901760
    %1155 = vmatpush.xpose.msra.mxu0 %v1154
    %v1156 = vand.u32 %v972, 4294901760
    %1157 = vmatpush.xpose.msra.mxu0 %v1156
    %v1158 = vand.u32 %v969, 4294901760
    %1159 = vmatpush.xpose.msra.mxu0 %v1158
    %v1160 = vand.u32 %v385, 4294901760
    %1161 = vmatmul.f32.gmra.mxu0 %v1160
    %v1162 = vpop.f32.mrf.mxu0
    %v1163 = vadd.f32 %v1138, %v1162
    %1164 = vdwg.mxu0
    %v1166 = vsel %vm383, %v1163, 0
    %1168 = vmatpush.xpose.msra.mxu0 0.0
    %1169 = vmatpush.xpose.msra.mxu0 0.0
    %1170 = vmatpush.xpose.msra.mxu0 0.0
    %1171 = vmatpush.xpose.msra.mxu0 0.0
    %1172 = vmatpush.xpose.msra.mxu0 0.0
    %1173 = vmatpush.xpose.msra.mxu0 0.0
    %1174 = vmatpush.xpose.msra.mxu0 0.0
    %1175 = vmatpush.xpose.msra.mxu0 0.0
    %1176 = vmatpush.xpose.msra.mxu0 0.0
    %1177 = vmatpush.xpose.msra.mxu0 0.0
    %1178 = vmatpush.xpose.msra.mxu0 0.0
    %1179 = vmatpush.xpose.msra.mxu0 0.0
    %v1180 = vand.u32 %v978, 4294901760
    %1181 = vmatpush.xpose.msra.mxu0 %v1180
    %v1182 = vand.u32 %v975, 4294901760
    %1183 = vmatpush.xpose.msra.mxu0 %v1182
    %v1184 = vand.u32 %v972, 4294901760
    %1185 = vmatpush.xpose.msra.mxu0 %v1184
    %v1186 = vand.u32 %v969, 4294901760
    %1187 = vmatpush.xpose.msra.mxu0 %v1186
    %v1188 = vand.u32 %v1166, 4294901760
    %v1189 = vsub.f32 %v1166, %v1188
    %v1190 = vand.u32 %v1189, 4294901760
    %v1191 = vsub.f32 %v1189, %v1190
    %v1192 = vand.u32 %v1191, 4294901760
    %1193 = vmatmul.f32.gmra.mxu0 %v1192
    %v1194 = vpop.f32.mrf.mxu0
    %v1195 = vadd.f32 %v958, %v1194
    %1196 = vdwg.mxu0
    %1197 = vmatpush.xpose.msra.mxu0 0.0
    %1198 = vmatpush.xpose.msra.mxu0 0.0
    %1199 = vmatpush.xpose.msra.mxu0 0.0
    %1200 = vmatpush.xpose.msra.mxu0 0.0
    %1201 = vmatpush.xpose.msra.mxu0 0.0
    %1202 = vmatpush.xpose.msra.mxu0 0.0
    %1203 = vmatpush.xpose.msra.mxu0 0.0
    %1204 = vmatpush.xpose.msra.mxu0 0.0
    %1205 = vmatpush.xpose.msra.mxu0 0.0
    %1206 = vmatpush.xpose.msra.mxu0 0.0
    %1207 = vmatpush.xpose.msra.mxu0 0.0
    %1208 = vmatpush.xpose.msra.mxu0 0.0
    %v1209 = vand.u32 %v978, 4294901760
    %v1210 = vsub.f32 %v978, %v1209
    %v1211 = vand.u32 %v1210, 4294901760
    %v1212 = vsub.f32 %v1210, %v1211
    %v1213 = vand.u32 %v1212, 4294901760
    %1214 = vmatpush.xpose.msra.mxu0 %v1213
    %v1215 = vand.u32 %v975, 4294901760
    %v1216 = vsub.f32 %v975, %v1215
    %v1217 = vand.u32 %v1216, 4294901760
    %v1218 = vsub.f32 %v1216, %v1217
    %v1219 = vand.u32 %v1218, 4294901760
    %1220 = vmatpush.xpose.msra.mxu0 %v1219
    %v1221 = vand.u32 %v972, 4294901760
    %v1222 = vsub.f32 %v972, %v1221
    %v1223 = vand.u32 %v1222, 4294901760
    %v1224 = vsub.f32 %v1222, %v1223
    %v1225 = vand.u32 %v1224, 4294901760
    %1226 = vmatpush.xpose.msra.mxu0 %v1225
    %v1227 = vand.u32 %v969, 4294901760
    %v1228 = vsub.f32 %v969, %v1227
    %v1229 = vand.u32 %v1228, 4294901760
    %v1230 = vsub.f32 %v1228, %v1229
    %v1231 = vand.u32 %v1230, 4294901760
    %1232 = vmatpush.xpose.msra.mxu0 %v1231
    %v1233 = vand.u32 %v1166, 4294901760
    %1234 = vmatmul.f32.gmra.mxu0 %v1233
    %v1235 = vpop.f32.mrf.mxu0
    %v1236 = vadd.f32 %v1195, %v1235
    %1237 = vdwg.mxu0
    %1238 = vmatpush.xpose.msra.mxu0 0.0
    %1239 = vmatpush.xpose.msra.mxu0 0.0
    %1240 = vmatpush.xpose.msra.mxu0 0.0
    %1241 = vmatpush.xpose.msra.mxu0 0.0
    %1242 = vmatpush.xpose.msra.mxu0 0.0
    %1243 = vmatpush.xpose.msra.mxu0 0.0
    %1244 = vmatpush.xpose.msra.mxu0 0.0
    %1245 = vmatpush.xpose.msra.mxu0 0.0
    %1246 = vmatpush.xpose.msra.mxu0 0.0
    %1247 = vmatpush.xpose.msra.mxu0 0.0
    %1248 = vmatpush.xpose.msra.mxu0 0.0
    %1249 = vmatpush.xpose.msra.mxu0 0.0
    %v1250 = vand.u32 %v978, 4294901760
    %v1251 = vsub.f32 %v978, %v1250
    %1252 = vmatpush.xpose.msra.mxu0 %v1251
    %v1253 = vand.u32 %v975, 4294901760
    %v1254 = vsub.f32 %v975, %v1253
    %1255 = vmatpush.xpose.msra.mxu0 %v1254
    %v1256 = vand.u32 %v972, 4294901760
    %v1257 = vsub.f32 %v972, %v1256
    %1258 = vmatpush.xpose.msra.mxu0 %v1257
    %v1259 = vand.u32 %v969, 4294901760
    %v1260 = vsub.f32 %v969, %v1259
    %1261 = vmatpush.xpose.msra.mxu0 %v1260
    %v1262 = vand.u32 %v1166, 4294901760
    %v1263 = vsub.f32 %v1166, %v1262
    %1264 = vmatmul.f32.gmra.mxu0 %v1263
    %v1265 = vpop.f32.mrf.mxu0
    %v1266 = vadd.f32 %v1236, %v1265
    %1267 = vdwg.mxu0
    %1268 = vmatpush.xpose.msra.mxu0 0.0
    %1269 = vmatpush.xpose.msra.mxu0 0.0
    %1270 = vmatpush.xpose.msra.mxu0 0.0
    %1271 = vmatpush.xpose.msra.mxu0 0.0
    %1272 = vmatpush.xpose.msra.mxu0 0.0
    %1273 = vmatpush.xpose.msra.mxu0 0.0
    %1274 = vmatpush.xpose.msra.mxu0 0.0
    %1275 = vmatpush.xpose.msra.mxu0 0.0
    %1276 = vmatpush.xpose.msra.mxu0 0.0
    %1277 = vmatpush.xpose.msra.mxu0 0.0
    %1278 = vmatpush.xpose.msra.mxu0 0.0
    %1279 = vmatpush.xpose.msra.mxu0 0.0
    %v1280 = vand.u32 %v978, 4294901760
    %1281 = vmatpush.xpose.msra.mxu0 %v1280
    %v1282 = vand.u32 %v975, 4294901760
    %1283 = vmatpush.xpose.msra.mxu0 %v1282
    %v1284 = vand.u32 %v972, 4294901760
    %1285 = vmatpush.xpose.msra.mxu0 %v1284
    %v1286 = vand.u32 %v969, 4294901760
    %1287 = vmatpush.xpose.msra.mxu0 %v1286
    %v1288 = vand.u32 %v1166, 4294901760
    %v1289 = vsub.f32 %v1166, %v1288
    %v1290 = vand.u32 %v1289, 4294901760
    %1291 = vmatmul.f32.gmra.mxu0 %v1290
    %v1292 = vpop.f32.mrf.mxu0
    %v1293 = vadd.f32 %v1266, %v1292
    %1294 = vdwg.mxu0
    %1295 = vmatpush.xpose.msra.mxu0 0.0
    %1296 = vmatpush.xpose.msra.mxu0 0.0
    %1297 = vmatpush.xpose.msra.mxu0 0.0
    %1298 = vmatpush.xpose.msra.mxu0 0.0
    %1299 = vmatpush.xpose.msra.mxu0 0.0
    %1300 = vmatpush.xpose.msra.mxu0 0.0
    %1301 = vmatpush.xpose.msra.mxu0 0.0
    %1302 = vmatpush.xpose.msra.mxu0 0.0
    %1303 = vmatpush.xpose.msra.mxu0 0.0
    %1304 = vmatpush.xpose.msra.mxu0 0.0
    %1305 = vmatpush.xpose.msra.mxu0 0.0
    %1306 = vmatpush.xpose.msra.mxu0 0.0
    %v1307 = vand.u32 %v978, 4294901760
    %v1308 = vsub.f32 %v978, %v1307
    %v1309 = vand.u32 %v1308, 4294901760
    %1310 = vmatpush.xpose.msra.mxu0 %v1309
    %v1311 = vand.u32 %v975, 4294901760
    %v1312 = vsub.f32 %v975, %v1311
    %v1313 = vand.u32 %v1312, 4294901760
    %1314 = vmatpush.xpose.msra.mxu0 %v1313
    %v1315 = vand.u32 %v972, 4294901760
    %v1316 = vsub.f32 %v972, %v1315
    %v1317 = vand.u32 %v1316, 4294901760
    %1318 = vmatpush.xpose.msra.mxu0 %v1317
    %v1319 = vand.u32 %v969, 4294901760
    %v1320 = vsub.f32 %v969, %v1319
    %v1321 = vand.u32 %v1320, 4294901760
    %1322 = vmatpush.xpose.msra.mxu0 %v1321
    %v1323 = vand.u32 %v1166, 4294901760
    %1324 = vmatmul.f32.gmra.mxu0 %v1323
    %v1325 = vpop.f32.mrf.mxu0
    %v1326 = vadd.f32 %v1293, %v1325
    %1327 = vdwg.mxu0
    %1328 = vmatpush.xpose.msra.mxu0 0.0
    %1329 = vmatpush.xpose.msra.mxu0 0.0
    %1330 = vmatpush.xpose.msra.mxu0 0.0
    %1331 = vmatpush.xpose.msra.mxu0 0.0
    %1332 = vmatpush.xpose.msra.mxu0 0.0
    %1333 = vmatpush.xpose.msra.mxu0 0.0
    %1334 = vmatpush.xpose.msra.mxu0 0.0
    %1335 = vmatpush.xpose.msra.mxu0 0.0
    %1336 = vmatpush.xpose.msra.mxu0 0.0
    %1337 = vmatpush.xpose.msra.mxu0 0.0
    %1338 = vmatpush.xpose.msra.mxu0 0.0
    %1339 = vmatpush.xpose.msra.mxu0 0.0
    %v1340 = vand.u32 %v978, 4294901760
    %1341 = vmatpush.xpose.msra.mxu0 %v1340
    %v1342 = vand.u32 %v975, 4294901760
    %1343 = vmatpush.xpose.msra.mxu0 %v1342
    %v1344 = vand.u32 %v972, 4294901760
    %1345 = vmatpush.xpose.msra.mxu0 %v1344
    %v1346 = vand.u32 %v969, 4294901760
    %1347 = vmatpush.xpose.msra.mxu0 %v1346
    %v1348 = vand.u32 %v1166, 4294901760
    %1349 = vmatmul.f32.gmra.mxu0 %v1348
    %v1350 = vpop.f32.mrf.mxu0
    %v1351 = vadd.f32 %v1326, %v1350
    %1352 = vdwg.mxu0
    %v1354 = vsel %vm383, %v1351, 0
    %1356 = vmatpush.xpose.msra.mxu0 0.0
    %1357 = vmatpush.xpose.msra.mxu0 0.0
    %1358 = vmatpush.xpose.msra.mxu0 0.0
    %1359 = vmatpush.xpose.msra.mxu0 0.0
    %1360 = vmatpush.xpose.msra.mxu0 0.0
    %1361 = vmatpush.xpose.msra.mxu0 0.0
    %1362 = vmatpush.xpose.msra.mxu0 0.0
    %1363 = vmatpush.xpose.msra.mxu0 0.0
    %1364 = vmatpush.xpose.msra.mxu0 0.0
    %1365 = vmatpush.xpose.msra.mxu0 0.0
    %1366 = vmatpush.xpose.msra.mxu0 0.0
    %1367 = vmatpush.xpose.msra.mxu0 0.0
    %v1368 = vand.u32 %v978, 4294901760
    %1369 = vmatpush.xpose.msra.mxu0 %v1368
    %v1370 = vand.u32 %v975, 4294901760
    %1371 = vmatpush.xpose.msra.mxu0 %v1370
    %v1372 = vand.u32 %v972, 4294901760
    %1373 = vmatpush.xpose.msra.mxu0 %v1372
    %v1374 = vand.u32 %v969, 4294901760
    %1375 = vmatpush.xpose.msra.mxu0 %v1374
    %v1376 = vand.u32 %v1354, 4294901760
    %v1377 = vsub.f32 %v1354, %v1376
    %v1378 = vand.u32 %v1377, 4294901760
    %v1379 = vsub.f32 %v1377, %v1378
    %v1380 = vand.u32 %v1379, 4294901760
    %1381 = vmatmul.f32.gmra.mxu0 %v1380
    %v1382 = vpop.f32.mrf.mxu0
    %v1383 = vadd.f32 %v962, %v1382
    %1384 = vdwg.mxu0
    %1385 = vmatpush.xpose.msra.mxu0 0.0
    %1386 = vmatpush.xpose.msra.mxu0 0.0
    %1387 = vmatpush.xpose.msra.mxu0 0.0
    %1388 = vmatpush.xpose.msra.mxu0 0.0
    %1389 = vmatpush.xpose.msra.mxu0 0.0
    %1390 = vmatpush.xpose.msra.mxu0 0.0
    %1391 = vmatpush.xpose.msra.mxu0 0.0
    %1392 = vmatpush.xpose.msra.mxu0 0.0
    %1393 = vmatpush.xpose.msra.mxu0 0.0
    %1394 = vmatpush.xpose.msra.mxu0 0.0
    %1395 = vmatpush.xpose.msra.mxu0 0.0
    %1396 = vmatpush.xpose.msra.mxu0 0.0
    %v1397 = vand.u32 %v978, 4294901760
    %v1398 = vsub.f32 %v978, %v1397
    %v1399 = vand.u32 %v1398, 4294901760
    %v1400 = vsub.f32 %v1398, %v1399
    %v1401 = vand.u32 %v1400, 4294901760
    %1402 = vmatpush.xpose.msra.mxu0 %v1401
    %v1403 = vand.u32 %v975, 4294901760
    %v1404 = vsub.f32 %v975, %v1403
    %v1405 = vand.u32 %v1404, 4294901760
    %v1406 = vsub.f32 %v1404, %v1405
    %v1407 = vand.u32 %v1406, 4294901760
    %1408 = vmatpush.xpose.msra.mxu0 %v1407
    %v1409 = vand.u32 %v972, 4294901760
    %v1410 = vsub.f32 %v972, %v1409
    %v1411 = vand.u32 %v1410, 4294901760
    %v1412 = vsub.f32 %v1410, %v1411
    %v1413 = vand.u32 %v1412, 4294901760
    %1414 = vmatpush.xpose.msra.mxu0 %v1413
    %v1415 = vand.u32 %v969, 4294901760
    %v1416 = vsub.f32 %v969, %v1415
    %v1417 = vand.u32 %v1416, 4294901760
    %v1418 = vsub.f32 %v1416, %v1417
    %v1419 = vand.u32 %v1418, 4294901760
    %1420 = vmatpush.xpose.msra.mxu0 %v1419
    %v1421 = vand.u32 %v1354, 4294901760
    %1422 = vmatmul.f32.gmra.mxu0 %v1421
    %v1423 = vpop.f32.mrf.mxu0
    %v1424 = vadd.f32 %v1383, %v1423
    %1425 = vdwg.mxu0
    %1426 = vmatpush.xpose.msra.mxu0 0.0
    %1427 = vmatpush.xpose.msra.mxu0 0.0
    %1428 = vmatpush.xpose.msra.mxu0 0.0
    %1429 = vmatpush.xpose.msra.mxu0 0.0
    %1430 = vmatpush.xpose.msra.mxu0 0.0
    %1431 = vmatpush.xpose.msra.mxu0 0.0
    %1432 = vmatpush.xpose.msra.mxu0 0.0
    %1433 = vmatpush.xpose.msra.mxu0 0.0
    %1434 = vmatpush.xpose.msra.mxu0 0.0
    %1435 = vmatpush.xpose.msra.mxu0 0.0
    %1436 = vmatpush.xpose.msra.mxu0 0.0
    %1437 = vmatpush.xpose.msra.mxu0 0.0
    %v1438 = vand.u32 %v978, 4294901760
    %v1439 = vsub.f32 %v978, %v1438
    %1440 = vmatpush.xpose.msra.mxu0 %v1439
    %v1441 = vand.u32 %v975, 4294901760
    %v1442 = vsub.f32 %v975, %v1441
    %1443 = vmatpush.xpose.msra.mxu0 %v1442
    %v1444 = vand.u32 %v972, 4294901760
    %v1445 = vsub.f32 %v972, %v1444
    %1446 = vmatpush.xpose.msra.mxu0 %v1445
    %v1447 = vand.u32 %v969, 4294901760
    %v1448 = vsub.f32 %v969, %v1447
    %1449 = vmatpush.xpose.msra.mxu0 %v1448
    %v1450 = vand.u32 %v1354, 4294901760
    %v1451 = vsub.f32 %v1354, %v1450
    %1452 = vmatmul.f32.gmra.mxu0 %v1451
    %v1453 = vpop.f32.mrf.mxu0
    %v1454 = vadd.f32 %v1424, %v1453
    %1455 = vdwg.mxu0
    %1456 = vmatpush.xpose.msra.mxu0 0.0
    %1457 = vmatpush.xpose.msra.mxu0 0.0
    %1458 = vmatpush.xpose.msra.mxu0 0.0
    %1459 = vmatpush.xpose.msra.mxu0 0.0
    %1460 = vmatpush.xpose.msra.mxu0 0.0
    %1461 = vmatpush.xpose.msra.mxu0 0.0
    %1462 = vmatpush.xpose.msra.mxu0 0.0
    %1463 = vmatpush.xpose.msra.mxu0 0.0
    %1464 = vmatpush.xpose.msra.mxu0 0.0
    %1465 = vmatpush.xpose.msra.mxu0 0.0
    %1466 = vmatpush.xpose.msra.mxu0 0.0
    %1467 = vmatpush.xpose.msra.mxu0 0.0
    %v1468 = vand.u32 %v978, 4294901760
    %1469 = vmatpush.xpose.msra.mxu0 %v1468
    %v1470 = vand.u32 %v975, 4294901760
    %1471 = vmatpush.xpose.msra.mxu0 %v1470
    %v1472 = vand.u32 %v972, 4294901760
    %1473 = vmatpush.xpose.msra.mxu0 %v1472
    %v1474 = vand.u32 %v969, 4294901760
    %1475 = vmatpush.xpose.msra.mxu0 %v1474
    %v1476 = vand.u32 %v1354, 4294901760
    %v1477 = vsub.f32 %v1354, %v1476
    %v1478 = vand.u32 %v1477, 4294901760
    %1479 = vmatmul.f32.gmra.mxu0 %v1478
    %v1480 = vpop.f32.mrf.mxu0
    %v1481 = vadd.f32 %v1454, %v1480
    %1482 = vdwg.mxu0
    %1483 = vmatpush.xpose.msra.mxu0 0.0
    %1484 = vmatpush.xpose.msra.mxu0 0.0
    %1485 = vmatpush.xpose.msra.mxu0 0.0
    %1486 = vmatpush.xpose.msra.mxu0 0.0
    %1487 = vmatpush.xpose.msra.mxu0 0.0
    %1488 = vmatpush.xpose.msra.mxu0 0.0
    %1489 = vmatpush.xpose.msra.mxu0 0.0
    %1490 = vmatpush.xpose.msra.mxu0 0.0
    %1491 = vmatpush.xpose.msra.mxu0 0.0
    %1492 = vmatpush.xpose.msra.mxu0 0.0
    %1493 = vmatpush.xpose.msra.mxu0 0.0
    %1494 = vmatpush.xpose.msra.mxu0 0.0
    %v1495 = vand.u32 %v978, 4294901760
    %v1496 = vsub.f32 %v978, %v1495
    %v1497 = vand.u32 %v1496, 4294901760
    %1498 = vmatpush.xpose.msra.mxu0 %v1497
    %v1499 = vand.u32 %v975, 4294901760
    %v1500 = vsub.f32 %v975, %v1499
    %v1501 = vand.u32 %v1500, 4294901760
    %1502 = vmatpush.xpose.msra.mxu0 %v1501
    %v1503 = vand.u32 %v972, 4294901760
    %v1504 = vsub.f32 %v972, %v1503
    %v1505 = vand.u32 %v1504, 4294901760
    %1506 = vmatpush.xpose.msra.mxu0 %v1505
    %v1507 = vand.u32 %v969, 4294901760
    %v1508 = vsub.f32 %v969, %v1507
    %v1509 = vand.u32 %v1508, 4294901760
    %1510 = vmatpush.xpose.msra.mxu0 %v1509
    %v1511 = vand.u32 %v1354, 4294901760
    %1512 = vmatmul.f32.gmra.mxu0 %v1511
    %v1513 = vpop.f32.mrf.mxu0
    %v1514 = vadd.f32 %v1481, %v1513
    %1515 = vdwg.mxu0
    %1516 = vmatpush.xpose.msra.mxu0 0.0
    %1517 = vmatpush.xpose.msra.mxu0 0.0
    %1518 = vmatpush.xpose.msra.mxu0 0.0
    %1519 = vmatpush.xpose.msra.mxu0 0.0
    %1520 = vmatpush.xpose.msra.mxu0 0.0
    %1521 = vmatpush.xpose.msra.mxu0 0.0
    %1522 = vmatpush.xpose.msra.mxu0 0.0
    %1523 = vmatpush.xpose.msra.mxu0 0.0
    %1524 = vmatpush.xpose.msra.mxu0 0.0
    %1525 = vmatpush.xpose.msra.mxu0 0.0
    %1526 = vmatpush.xpose.msra.mxu0 0.0
    %1527 = vmatpush.xpose.msra.mxu0 0.0
    %v1528 = vand.u32 %v978, 4294901760
    %1529 = vmatpush.xpose.msra.mxu0 %v1528
    %v1530 = vand.u32 %v975, 4294901760
    %1531 = vmatpush.xpose.msra.mxu0 %v1530
    %v1532 = vand.u32 %v972, 4294901760
    %1533 = vmatpush.xpose.msra.mxu0 %v1532
    %v1534 = vand.u32 %v969, 4294901760
    %1535 = vmatpush.xpose.msra.mxu0 %v1534
    %v1536 = vand.u32 %v1354, 4294901760
    %1537 = vmatmul.f32.gmra.mxu0 %v1536
    %v1538 = vpop.f32.mrf.mxu0
    %v1539 = vadd.f32 %v1514, %v1538
    %1540 = vdwg.mxu0
    %v1542 = vsel %vm383, %v1539, 0
    %1544 = vmatpush.xpose.msra.mxu0 0.0
    %1545 = vmatpush.xpose.msra.mxu0 0.0
    %1546 = vmatpush.xpose.msra.mxu0 0.0
    %1547 = vmatpush.xpose.msra.mxu0 0.0
    %1548 = vmatpush.xpose.msra.mxu0 0.0
    %1549 = vmatpush.xpose.msra.mxu0 0.0
    %1550 = vmatpush.xpose.msra.mxu0 0.0
    %1551 = vmatpush.xpose.msra.mxu0 0.0
    %1552 = vmatpush.xpose.msra.mxu0 0.0
    %1553 = vmatpush.xpose.msra.mxu0 0.0
    %1554 = vmatpush.xpose.msra.mxu0 0.0
    %1555 = vmatpush.xpose.msra.mxu0 0.0
    %v1556 = vand.u32 %v978, 4294901760
    %1557 = vmatpush.xpose.msra.mxu0 %v1556
    %v1558 = vand.u32 %v975, 4294901760
    %1559 = vmatpush.xpose.msra.mxu0 %v1558
    %v1560 = vand.u32 %v972, 4294901760
    %1561 = vmatpush.xpose.msra.mxu0 %v1560
    %v1562 = vand.u32 %v969, 4294901760
    %1563 = vmatpush.xpose.msra.mxu0 %v1562
    %v1564 = vand.u32 %v1542, 4294901760
    %v1565 = vsub.f32 %v1542, %v1564
    %v1566 = vand.u32 %v1565, 4294901760
    %v1567 = vsub.f32 %v1565, %v1566
    %v1568 = vand.u32 %v1567, 4294901760
    %1569 = vmatmul.f32.gmra.mxu0 %v1568
    %v1570 = vpop.f32.mrf.mxu0
    %v1571 = vadd.f32 %v966, %v1570
    %1572 = vdwg.mxu0
    %1573 = vmatpush.xpose.msra.mxu0 0.0
    %1574 = vmatpush.xpose.msra.mxu0 0.0
    %1575 = vmatpush.xpose.msra.mxu0 0.0
    %1576 = vmatpush.xpose.msra.mxu0 0.0
    %1577 = vmatpush.xpose.msra.mxu0 0.0
    %1578 = vmatpush.xpose.msra.mxu0 0.0
    %1579 = vmatpush.xpose.msra.mxu0 0.0
    %1580 = vmatpush.xpose.msra.mxu0 0.0
    %1581 = vmatpush.xpose.msra.mxu0 0.0
    %1582 = vmatpush.xpose.msra.mxu0 0.0
    %1583 = vmatpush.xpose.msra.mxu0 0.0
    %1584 = vmatpush.xpose.msra.mxu0 0.0
    %v1585 = vand.u32 %v978, 4294901760
    %v1586 = vsub.f32 %v978, %v1585
    %v1587 = vand.u32 %v1586, 4294901760
    %v1588 = vsub.f32 %v1586, %v1587
    %v1589 = vand.u32 %v1588, 4294901760
    %1590 = vmatpush.xpose.msra.mxu0 %v1589
    %v1591 = vand.u32 %v975, 4294901760
    %v1592 = vsub.f32 %v975, %v1591
    %v1593 = vand.u32 %v1592, 4294901760
    %v1594 = vsub.f32 %v1592, %v1593
    %v1595 = vand.u32 %v1594, 4294901760
    %1596 = vmatpush.xpose.msra.mxu0 %v1595
    %v1597 = vand.u32 %v972, 4294901760
    %v1598 = vsub.f32 %v972, %v1597
    %v1599 = vand.u32 %v1598, 4294901760
    %v1600 = vsub.f32 %v1598, %v1599
    %v1601 = vand.u32 %v1600, 4294901760
    %1602 = vmatpush.xpose.msra.mxu0 %v1601
    %v1603 = vand.u32 %v969, 4294901760
    %v1604 = vsub.f32 %v969, %v1603
    %v1605 = vand.u32 %v1604, 4294901760
    %v1606 = vsub.f32 %v1604, %v1605
    %v1607 = vand.u32 %v1606, 4294901760
    %1608 = vmatpush.xpose.msra.mxu0 %v1607
    %v1609 = vand.u32 %v1542, 4294901760
    %1610 = vmatmul.f32.gmra.mxu0 %v1609
    %v1611 = vpop.f32.mrf.mxu0
    %v1612 = vadd.f32 %v1571, %v1611
    %1613 = vdwg.mxu0
    %1614 = vmatpush.xpose.msra.mxu0 0.0
    %1615 = vmatpush.xpose.msra.mxu0 0.0
    %1616 = vmatpush.xpose.msra.mxu0 0.0
    %1617 = vmatpush.xpose.msra.mxu0 0.0
    %1618 = vmatpush.xpose.msra.mxu0 0.0
    %1619 = vmatpush.xpose.msra.mxu0 0.0
    %1620 = vmatpush.xpose.msra.mxu0 0.0
    %1621 = vmatpush.xpose.msra.mxu0 0.0
    %1622 = vmatpush.xpose.msra.mxu0 0.0
    %1623 = vmatpush.xpose.msra.mxu0 0.0
    %1624 = vmatpush.xpose.msra.mxu0 0.0
    %1625 = vmatpush.xpose.msra.mxu0 0.0
    %v1626 = vand.u32 %v978, 4294901760
    %v1627 = vsub.f32 %v978, %v1626
    %1628 = vmatpush.xpose.msra.mxu0 %v1627
    %v1629 = vand.u32 %v975, 4294901760
    %v1630 = vsub.f32 %v975, %v1629
    %1631 = vmatpush.xpose.msra.mxu0 %v1630
    %v1632 = vand.u32 %v972, 4294901760
    %v1633 = vsub.f32 %v972, %v1632
    %1634 = vmatpush.xpose.msra.mxu0 %v1633
    %v1635 = vand.u32 %v969, 4294901760
    %v1636 = vsub.f32 %v969, %v1635
    %1637 = vmatpush.xpose.msra.mxu0 %v1636
    %v1638 = vand.u32 %v1542, 4294901760
    %v1639 = vsub.f32 %v1542, %v1638
    %1640 = vmatmul.f32.gmra.mxu0 %v1639
    %v1641 = vpop.f32.mrf.mxu0
    %v1642 = vadd.f32 %v1612, %v1641
    %1643 = vdwg.mxu0
    %1644 = vmatpush.xpose.msra.mxu0 0.0
    %1645 = vmatpush.xpose.msra.mxu0 0.0
    %1646 = vmatpush.xpose.msra.mxu0 0.0
    %1647 = vmatpush.xpose.msra.mxu0 0.0
    %1648 = vmatpush.xpose.msra.mxu0 0.0
    %1649 = vmatpush.xpose.msra.mxu0 0.0
    %1650 = vmatpush.xpose.msra.mxu0 0.0
    %1651 = vmatpush.xpose.msra.mxu0 0.0
    %1652 = vmatpush.xpose.msra.mxu0 0.0
    %1653 = vmatpush.xpose.msra.mxu0 0.0
    %1654 = vmatpush.xpose.msra.mxu0 0.0
    %1655 = vmatpush.xpose.msra.mxu0 0.0
    %v1656 = vand.u32 %v978, 4294901760
    %1657 = vmatpush.xpose.msra.mxu0 %v1656
    %v1658 = vand.u32 %v975, 4294901760
    %1659 = vmatpush.xpose.msra.mxu0 %v1658
    %v1660 = vand.u32 %v972, 4294901760
    %1661 = vmatpush.xpose.msra.mxu0 %v1660
    %v1662 = vand.u32 %v969, 4294901760
    %1663 = vmatpush.xpose.msra.mxu0 %v1662
    %v1664 = vand.u32 %v1542, 4294901760
    %v1665 = vsub.f32 %v1542, %v1664
    %v1666 = vand.u32 %v1665, 4294901760
    %1667 = vmatmul.f32.gmra.mxu0 %v1666
    %v1668 = vpop.f32.mrf.mxu0
    %v1669 = vadd.f32 %v1642, %v1668
    %1670 = vdwg.mxu0
    %1671 = vmatpush.xpose.msra.mxu0 0.0
    %1672 = vmatpush.xpose.msra.mxu0 0.0
    %1673 = vmatpush.xpose.msra.mxu0 0.0
    %1674 = vmatpush.xpose.msra.mxu0 0.0
    %1675 = vmatpush.xpose.msra.mxu0 0.0
    %1676 = vmatpush.xpose.msra.mxu0 0.0
    %1677 = vmatpush.xpose.msra.mxu0 0.0
    %1678 = vmatpush.xpose.msra.mxu0 0.0
    %1679 = vmatpush.xpose.msra.mxu0 0.0
    %1680 = vmatpush.xpose.msra.mxu0 0.0
    %1681 = vmatpush.xpose.msra.mxu0 0.0
    %1682 = vmatpush.xpose.msra.mxu0 0.0
    %v1683 = vand.u32 %v978, 4294901760
    %v1684 = vsub.f32 %v978, %v1683
    %v1685 = vand.u32 %v1684, 4294901760
    %1686 = vmatpush.xpose.msra.mxu0 %v1685
    %v1687 = vand.u32 %v975, 4294901760
    %v1688 = vsub.f32 %v975, %v1687
    %v1689 = vand.u32 %v1688, 4294901760
    %1690 = vmatpush.xpose.msra.mxu0 %v1689
    %v1691 = vand.u32 %v972, 4294901760
    %v1692 = vsub.f32 %v972, %v1691
    %v1693 = vand.u32 %v1692, 4294901760
    %1694 = vmatpush.xpose.msra.mxu0 %v1693
    %v1695 = vand.u32 %v969, 4294901760
    %v1696 = vsub.f32 %v969, %v1695
    %v1697 = vand.u32 %v1696, 4294901760
    %1698 = vmatpush.xpose.msra.mxu0 %v1697
    %v1699 = vand.u32 %v1542, 4294901760
    %1700 = vmatmul.f32.gmra.mxu0 %v1699
    %v1701 = vpop.f32.mrf.mxu0
    %v1702 = vadd.f32 %v1669, %v1701
    %1703 = vdwg.mxu0
    %1704 = vmatpush.xpose.msra.mxu0 0.0
    %1705 = vmatpush.xpose.msra.mxu0 0.0
    %1706 = vmatpush.xpose.msra.mxu0 0.0
    %1707 = vmatpush.xpose.msra.mxu0 0.0
    %1708 = vmatpush.xpose.msra.mxu0 0.0
    %1709 = vmatpush.xpose.msra.mxu0 0.0
    %1710 = vmatpush.xpose.msra.mxu0 0.0
    %1711 = vmatpush.xpose.msra.mxu0 0.0
    %1712 = vmatpush.xpose.msra.mxu0 0.0
    %1713 = vmatpush.xpose.msra.mxu0 0.0
    %1714 = vmatpush.xpose.msra.mxu0 0.0
    %1715 = vmatpush.xpose.msra.mxu0 0.0
    %v1716 = vand.u32 %v978, 4294901760
    %1717 = vmatpush.xpose.msra.mxu0 %v1716
    %v1718 = vand.u32 %v975, 4294901760
    %1719 = vmatpush.xpose.msra.mxu0 %v1718
    %v1720 = vand.u32 %v972, 4294901760
    %1721 = vmatpush.xpose.msra.mxu0 %v1720
    %v1722 = vand.u32 %v969, 4294901760
    %1723 = vmatpush.xpose.msra.mxu0 %v1722
    %v1724 = vand.u32 %v1542, 4294901760
    %1725 = vmatmul.f32.gmra.mxu0 %v1724
    %v1726 = vpop.f32.mrf.mxu0
    %v1727 = vadd.f32 %v1702, %v1726
    %1728 = vdwg.mxu0
    %v1730 = vsel %vm383, %v1727, 0
    %1732 = vmatpush.xpose.msra.mxu0 0.0
    %1733 = vmatpush.xpose.msra.mxu0 0.0
    %1734 = vmatpush.xpose.msra.mxu0 0.0
    %1735 = vmatpush.xpose.msra.mxu0 0.0
    %1736 = vmatpush.xpose.msra.mxu0 0.0
    %1737 = vmatpush.xpose.msra.mxu0 0.0
    %1738 = vmatpush.xpose.msra.mxu0 0.0
    %1739 = vmatpush.xpose.msra.mxu0 0.0
    %1740 = vmatpush.xpose.msra.mxu0 0.0
    %1741 = vmatpush.xpose.msra.mxu0 0.0
    %1742 = vmatpush.xpose.msra.mxu0 0.0
    %1743 = vmatpush.xpose.msra.mxu0 0.0
    %1744 = vmatpush.xpose.msra.mxu0 0.0
    %1745 = vmatpush.xpose.msra.mxu0 0.0
    %1746 = vmatpush.xpose.msra.mxu0 0.0
    %v1747 = vand.u32 %v400, 4294901760
    %1748 = vmatpush.xpose.msra.mxu0 %v1747
    %v1749 = vand.u32 %v1166, 4294901760
    %v1750 = vsub.f32 %v1166, %v1749
    %v1751 = vand.u32 %v1750, 4294901760
    %v1752 = vsub.f32 %v1750, %v1751
    %v1753 = vand.u32 %v1752, 4294901760
    %1754 = vmatmul.f32.gmra.mxu0 %v1753
    %v1755 = vpop.f32.mrf.mxu0
    %v1756 = vadd.f32 0.0, %v1755
    %v1757 = vand.u32 %v1354, 4294901760
    %v1758 = vsub.f32 %v1354, %v1757
    %v1759 = vand.u32 %v1758, 4294901760
    %v1760 = vsub.f32 %v1758, %v1759
    %v1761 = vand.u32 %v1760, 4294901760
    %1762 = vmatmul.f32.gmra.mxu0 %v1761
    %v1763 = vpop.f32.mrf.mxu0
    %v1764 = vadd.f32 0.0, %v1763
    %v1765 = vand.u32 %v1542, 4294901760
    %v1766 = vsub.f32 %v1542, %v1765
    %v1767 = vand.u32 %v1766, 4294901760
    %v1768 = vsub.f32 %v1766, %v1767
    %v1769 = vand.u32 %v1768, 4294901760
    %1770 = vmatmul.f32.gmra.mxu0 %v1769
    %v1771 = vpop.f32.mrf.mxu0
    %v1772 = vadd.f32 0.0, %v1771
    %v1773 = vand.u32 %v1730, 4294901760
    %v1774 = vsub.f32 %v1730, %v1773
    %v1775 = vand.u32 %v1774, 4294901760
    %v1776 = vsub.f32 %v1774, %v1775
    %v1777 = vand.u32 %v1776, 4294901760
    %1778 = vmatmul.f32.gmra.mxu0 %v1777
    %v1779 = vpop.f32.mrf.mxu0
    %v1780 = vadd.f32 0.0, %v1779
    %1781 = vdwg.mxu0
    %1782 = vmatpush.xpose.msra.mxu0 0.0
    %1783 = vmatpush.xpose.msra.mxu0 0.0
    %1784 = vmatpush.xpose.msra.mxu0 0.0
    %1785 = vmatpush.xpose.msra.mxu0 0.0
    %1786 = vmatpush.xpose.msra.mxu0 0.0
    %1787 = vmatpush.xpose.msra.mxu0 0.0
    %1788 = vmatpush.xpose.msra.mxu0 0.0
    %1789 = vmatpush.xpose.msra.mxu0 0.0
    %1790 = vmatpush.xpose.msra.mxu0 0.0
    %1791 = vmatpush.xpose.msra.mxu0 0.0
    %1792 = vmatpush.xpose.msra.mxu0 0.0
    %1793 = vmatpush.xpose.msra.mxu0 0.0
    %1794 = vmatpush.xpose.msra.mxu0 0.0
    %1795 = vmatpush.xpose.msra.mxu0 0.0
    %1796 = vmatpush.xpose.msra.mxu0 0.0
    %v1797 = vand.u32 %v400, 4294901760
    %v1798 = vsub.f32 %v400, %v1797
    %v1799 = vand.u32 %v1798, 4294901760
    %v1800 = vsub.f32 %v1798, %v1799
    %v1801 = vand.u32 %v1800, 4294901760
    %1802 = vmatpush.xpose.msra.mxu0 %v1801
    %v1803 = vand.u32 %v1166, 4294901760
    %1804 = vmatmul.f32.gmra.mxu0 %v1803
    %v1805 = vpop.f32.mrf.mxu0
    %v1806 = vadd.f32 %v1756, %v1805
    %v1807 = vand.u32 %v1354, 4294901760
    %1808 = vmatmul.f32.gmra.mxu0 %v1807
    %v1809 = vpop.f32.mrf.mxu0
    %v1810 = vadd.f32 %v1764, %v1809
    %v1811 = vand.u32 %v1542, 4294901760
    %1812 = vmatmul.f32.gmra.mxu0 %v1811
    %v1813 = vpop.f32.mrf.mxu0
    %v1814 = vadd.f32 %v1772, %v1813
    %v1815 = vand.u32 %v1730, 4294901760
    %1816 = vmatmul.f32.gmra.mxu0 %v1815
    %v1817 = vpop.f32.mrf.mxu0
    %v1818 = vadd.f32 %v1780, %v1817
    %1819 = vdwg.mxu0
    %1820 = vmatpush.xpose.msra.mxu0 0.0
    %1821 = vmatpush.xpose.msra.mxu0 0.0
    %1822 = vmatpush.xpose.msra.mxu0 0.0
    %1823 = vmatpush.xpose.msra.mxu0 0.0
    %1824 = vmatpush.xpose.msra.mxu0 0.0
    %1825 = vmatpush.xpose.msra.mxu0 0.0
    %1826 = vmatpush.xpose.msra.mxu0 0.0
    %1827 = vmatpush.xpose.msra.mxu0 0.0
    %1828 = vmatpush.xpose.msra.mxu0 0.0
    %1829 = vmatpush.xpose.msra.mxu0 0.0
    %1830 = vmatpush.xpose.msra.mxu0 0.0
    %1831 = vmatpush.xpose.msra.mxu0 0.0
    %1832 = vmatpush.xpose.msra.mxu0 0.0
    %1833 = vmatpush.xpose.msra.mxu0 0.0
    %1834 = vmatpush.xpose.msra.mxu0 0.0
    %v1835 = vand.u32 %v400, 4294901760
    %v1836 = vsub.f32 %v400, %v1835
    %1837 = vmatpush.xpose.msra.mxu0 %v1836
    %v1838 = vand.u32 %v1166, 4294901760
    %v1839 = vsub.f32 %v1166, %v1838
    %1840 = vmatmul.f32.gmra.mxu0 %v1839
    %v1841 = vpop.f32.mrf.mxu0
    %v1842 = vadd.f32 %v1806, %v1841
    %v1843 = vand.u32 %v1354, 4294901760
    %v1844 = vsub.f32 %v1354, %v1843
    %1845 = vmatmul.f32.gmra.mxu0 %v1844
    %v1846 = vpop.f32.mrf.mxu0
    %v1847 = vadd.f32 %v1810, %v1846
    %v1848 = vand.u32 %v1542, 4294901760
    %v1849 = vsub.f32 %v1542, %v1848
    %1850 = vmatmul.f32.gmra.mxu0 %v1849
    %v1851 = vpop.f32.mrf.mxu0
    %v1852 = vadd.f32 %v1814, %v1851
    %v1853 = vand.u32 %v1730, 4294901760
    %v1854 = vsub.f32 %v1730, %v1853
    %1855 = vmatmul.f32.gmra.mxu0 %v1854
    %v1856 = vpop.f32.mrf.mxu0
    %v1857 = vadd.f32 %v1818, %v1856
    %1858 = vdwg.mxu0
    %1859 = vmatpush.xpose.msra.mxu0 0.0
    %1860 = vmatpush.xpose.msra.mxu0 0.0
    %1861 = vmatpush.xpose.msra.mxu0 0.0
    %1862 = vmatpush.xpose.msra.mxu0 0.0
    %1863 = vmatpush.xpose.msra.mxu0 0.0
    %1864 = vmatpush.xpose.msra.mxu0 0.0
    %1865 = vmatpush.xpose.msra.mxu0 0.0
    %1866 = vmatpush.xpose.msra.mxu0 0.0
    %1867 = vmatpush.xpose.msra.mxu0 0.0
    %1868 = vmatpush.xpose.msra.mxu0 0.0
    %1869 = vmatpush.xpose.msra.mxu0 0.0
    %1870 = vmatpush.xpose.msra.mxu0 0.0
    %1871 = vmatpush.xpose.msra.mxu0 0.0
    %1872 = vmatpush.xpose.msra.mxu0 0.0
    %1873 = vmatpush.xpose.msra.mxu0 0.0
    %v1874 = vand.u32 %v400, 4294901760
    %1875 = vmatpush.xpose.msra.mxu0 %v1874
    %v1876 = vand.u32 %v1166, 4294901760
    %v1877 = vsub.f32 %v1166, %v1876
    %v1878 = vand.u32 %v1877, 4294901760
    %1879 = vmatmul.f32.gmra.mxu0 %v1878
    %v1880 = vpop.f32.mrf.mxu0
    %v1881 = vadd.f32 %v1842, %v1880
    %v1882 = vand.u32 %v1354, 4294901760
    %v1883 = vsub.f32 %v1354, %v1882
    %v1884 = vand.u32 %v1883, 4294901760
    %1885 = vmatmul.f32.gmra.mxu0 %v1884
    %v1886 = vpop.f32.mrf.mxu0
    %v1887 = vadd.f32 %v1847, %v1886
    %v1888 = vand.u32 %v1542, 4294901760
    %v1889 = vsub.f32 %v1542, %v1888
    %v1890 = vand.u32 %v1889, 4294901760
    %1891 = vmatmul.f32.gmra.mxu0 %v1890
    %v1892 = vpop.f32.mrf.mxu0
    %v1893 = vadd.f32 %v1852, %v1892
    %v1894 = vand.u32 %v1730, 4294901760
    %v1895 = vsub.f32 %v1730, %v1894
    %v1896 = vand.u32 %v1895, 4294901760
    %1897 = vmatmul.f32.gmra.mxu0 %v1896
    %v1898 = vpop.f32.mrf.mxu0
    %v1899 = vadd.f32 %v1857, %v1898
    %1900 = vdwg.mxu0
    %1901 = vmatpush.xpose.msra.mxu0 0.0
    %1902 = vmatpush.xpose.msra.mxu0 0.0
    %1903 = vmatpush.xpose.msra.mxu0 0.0
    %1904 = vmatpush.xpose.msra.mxu0 0.0
    %1905 = vmatpush.xpose.msra.mxu0 0.0
    %1906 = vmatpush.xpose.msra.mxu0 0.0
    %1907 = vmatpush.xpose.msra.mxu0 0.0
    %1908 = vmatpush.xpose.msra.mxu0 0.0
    %1909 = vmatpush.xpose.msra.mxu0 0.0
    %1910 = vmatpush.xpose.msra.mxu0 0.0
    %1911 = vmatpush.xpose.msra.mxu0 0.0
    %1912 = vmatpush.xpose.msra.mxu0 0.0
    %1913 = vmatpush.xpose.msra.mxu0 0.0
    %1914 = vmatpush.xpose.msra.mxu0 0.0
    %1915 = vmatpush.xpose.msra.mxu0 0.0
    %v1916 = vand.u32 %v400, 4294901760
    %v1917 = vsub.f32 %v400, %v1916
    %v1918 = vand.u32 %v1917, 4294901760
    %1919 = vmatpush.xpose.msra.mxu0 %v1918
    %v1920 = vand.u32 %v1166, 4294901760
    %1921 = vmatmul.f32.gmra.mxu0 %v1920
    %v1922 = vpop.f32.mrf.mxu0
    %v1923 = vadd.f32 %v1881, %v1922
    %v1924 = vand.u32 %v1354, 4294901760
    %1925 = vmatmul.f32.gmra.mxu0 %v1924
    %v1926 = vpop.f32.mrf.mxu0
    %v1927 = vadd.f32 %v1887, %v1926
    %v1928 = vand.u32 %v1542, 4294901760
    %1929 = vmatmul.f32.gmra.mxu0 %v1928
    %v1930 = vpop.f32.mrf.mxu0
    %v1931 = vadd.f32 %v1893, %v1930
    %v1932 = vand.u32 %v1730, 4294901760
    %1933 = vmatmul.f32.gmra.mxu0 %v1932
    %v1934 = vpop.f32.mrf.mxu0
    %v1935 = vadd.f32 %v1899, %v1934
    %1936 = vdwg.mxu0
    %1937 = vmatpush.xpose.msra.mxu0 0.0
    %1938 = vmatpush.xpose.msra.mxu0 0.0
    %1939 = vmatpush.xpose.msra.mxu0 0.0
    %1940 = vmatpush.xpose.msra.mxu0 0.0
    %1941 = vmatpush.xpose.msra.mxu0 0.0
    %1942 = vmatpush.xpose.msra.mxu0 0.0
    %1943 = vmatpush.xpose.msra.mxu0 0.0
    %1944 = vmatpush.xpose.msra.mxu0 0.0
    %1945 = vmatpush.xpose.msra.mxu0 0.0
    %1946 = vmatpush.xpose.msra.mxu0 0.0
    %1947 = vmatpush.xpose.msra.mxu0 0.0
    %1948 = vmatpush.xpose.msra.mxu0 0.0
    %1949 = vmatpush.xpose.msra.mxu0 0.0
    %1950 = vmatpush.xpose.msra.mxu0 0.0
    %1951 = vmatpush.xpose.msra.mxu0 0.0
    %v1952 = vand.u32 %v400, 4294901760
    %1953 = vmatpush.xpose.msra.mxu0 %v1952
    %v1954 = vand.u32 %v1166, 4294901760
    %1955 = vmatmul.f32.gmra.mxu0 %v1954
    %v1956 = vpop.f32.mrf.mxu0
    %v1957 = vadd.f32 %v1923, %v1956
    %v1958 = vand.u32 %v1354, 4294901760
    %1959 = vmatmul.f32.gmra.mxu0 %v1958
    %v1960 = vpop.f32.mrf.mxu0
    %v1961 = vadd.f32 %v1927, %v1960
    %v1962 = vand.u32 %v1542, 4294901760
    %1963 = vmatmul.f32.gmra.mxu0 %v1962
    %v1964 = vpop.f32.mrf.mxu0
    %v1965 = vadd.f32 %v1931, %v1964
    %v1966 = vand.u32 %v1730, 4294901760
    %1967 = vmatmul.f32.gmra.mxu0 %v1966
    %v1968 = vpop.f32.mrf.mxu0
    %v1969 = vadd.f32 %v1935, %v1968
    %1970 = vdwg.mxu0
    %v1971 = vsub.f32 %v38, %v1957
    %v1972 = vsub.f32 %v39, %v1961
    %v1973 = vsub.f32 %v40, %v1965
    %v1974 = vsub.f32 %v41, %v1969
    %v1975 = vsub.f32 %v369, %v1163
    %v1976 = vsub.f32 %v373, %v1351
    %v1977 = vsub.f32 %v377, %v1539
    %v1978 = vsub.f32 %v381, %v1727
    %v1979 = vsub.f32 %v38, %v652
    %v1980 = vsub.f32 %v39, %v656
    %v1981 = vsub.f32 %v40, %v660
    %v1982 = vsub.f32 %v41, %v664
    %v1983 = vmul.f32 %v1971, %v1971
    %v1984 = vmul.f32 %v1972, %v1972
    %v1985 = vmul.f32 %v1973, %v1973
    %v1986 = vmul.f32 %v1974, %v1974
    %v1987 = vsel %vm46, %v1983, 0.0
    %v1988 = vsel %vm46, %v1984, 0.0
    %v1989 = vadd.f32 %v1987, %v1988
    %v1990 = vsel %vm46, %v1985, 0.0
    %v1991 = vadd.f32 %v1989, %v1990
    %v1992 = vsel %vm46, %v1986, 0.0
    %v1993 = vadd.f32 %v1991, %v1992
    %1994 = vadd.xlane.f32.xlu0 %v1993
    %v1995 = vpop.xlane.xlu0 %1994
    %v1996 = vrot.slane %v1995, 4
    %v1997 = vadd.f32 %v1995, %v1996
    %v1998 = vrot.slane %v1997, 2
    %v1999 = vadd.f32 %v1997, %v1998
    %v2000 = vrot.slane %v1999, 1
    %v2001 = vadd.f32 %v1999, %v2000
    %s2002 = vtos %v2001
    %v2003 = vstv %s2002
    %v2004 = vmul.f32 %v1975, %v1975
    %v2005 = vmul.f32 %v1976, %v1976
    %v2006 = vmul.f32 %v1977, %v1977
    %v2007 = vmul.f32 %v1978, %v1978
    %v2008 = vsel %vm383, %v2004, 0.0
    %v2009 = vsel %vm383, %v2005, 0.0
    %v2010 = vadd.f32 %v2008, %v2009
    %v2011 = vsel %vm383, %v2006, 0.0
    %v2012 = vadd.f32 %v2010, %v2011
    %v2013 = vsel %vm383, %v2007, 0.0
    %v2014 = vadd.f32 %v2012, %v2013
    %2015 = vadd.xlane.f32.xlu0 %v2014
    %v2016 = vpop.xlane.xlu0 %2015
    %v2017 = vrot.slane %v2016, 4
    %v2018 = vadd.f32 %v2016, %v2017
    %v2019 = vrot.slane %v2018, 2
    %v2020 = vadd.f32 %v2018, %v2019
    %v2021 = vrot.slane %v2020, 1
    %v2022 = vadd.f32 %v2020, %v2021
    %s2023 = vtos %v2022
    %v2024 = vstv %s2023
    %v2025 = vmul.f32 %v1979, %v1979
    %v2026 = vmul.f32 %v1980, %v1980
    %v2027 = vmul.f32 %v1981, %v1981
    %v2028 = vmul.f32 %v1982, %v1982
    %v2029 = vsel %vm46, %v2025, 0.0
    %v2030 = vsel %vm46, %v2026, 0.0
    %v2031 = vadd.f32 %v2029, %v2030
    %v2032 = vsel %vm46, %v2027, 0.0
    %v2033 = vadd.f32 %v2031, %v2032
    %v2034 = vsel %vm46, %v2028, 0.0
    %v2035 = vadd.f32 %v2033, %v2034
    %2036 = vadd.xlane.f32.xlu0 %v2035
    %v2037 = vpop.xlane.xlu0 %2036
    %v2038 = vrot.slane %v2037, 4
    %v2039 = vadd.f32 %v2037, %v2038
    %v2040 = vrot.slane %v2039, 2
    %v2041 = vadd.f32 %v2039, %v2040
    %v2042 = vrot.slane %v2041, 1
    %v2043 = vadd.f32 %v2041, %v2042
    %s2044 = vtos %v2043
    %v2045 = vstv %s2044
    %v2046 = vand.u32 2147483647, %v1971
    %v2047 = vand.u32 2147483647, %v1972
    %v2048 = vand.u32 2147483647, %v1973
    %v2049 = vand.u32 2147483647, %v1974
    %v2050 = vand.u32 2147483647, %v1979
    %v2051 = vand.u32 2147483647, %v1980
    %v2052 = vand.u32 2147483647, %v1981
    %v2053 = vand.u32 2147483647, %v1982
    %v2054 = vsel %vm46, %v2046, -inf
    %2055 = vmax.xlane.f32.xlu0 %v2054
    %v2056 = vpop.xlane.xlu0 %2055
    %v2057 = vrot.slane %v2056, 4
    %v2058 = vmax.f32 %v2056, %v2057
    %v2059 = vrot.slane %v2058, 2
    %v2060 = vmax.f32 %v2058, %v2059
    %v2061 = vrot.slane %v2060, 1
    %v2062 = vmax.f32 %v2060, %v2061
    %s2063 = vtos %v2062
    %v2064 = vstv %s2063
    %v2065 = vsel %vm46, %v2050, -inf
    %2066 = vmax.xlane.f32.xlu0 %v2065
    %v2067 = vpop.xlane.xlu0 %2066
    %v2068 = vrot.slane %v2067, 4
    %v2069 = vmax.f32 %v2067, %v2068
    %v2070 = vrot.slane %v2069, 2
    %v2071 = vmax.f32 %v2069, %v2070
    %v2072 = vrot.slane %v2071, 1
    %v2073 = vmax.f32 %v2071, %v2072
    %s2074 = vtos %v2073
    %v2075 = vstv %s2074
    %v2076 = vadd.f32 %v2064, %v2075
    %v2077 = vadd.f32 %v2076, 0.0
    %v2078 = vsel %vm46, %v2047, -inf
    %2079 = vmax.xlane.f32.xlu0 %v2078
    %v2080 = vpop.xlane.xlu0 %2079
    %v2081 = vrot.slane %v2080, 4
    %v2082 = vmax.f32 %v2080, %v2081
    %v2083 = vrot.slane %v2082, 2
    %v2084 = vmax.f32 %v2082, %v2083
    %v2085 = vrot.slane %v2084, 1
    %v2086 = vmax.f32 %v2084, %v2085
    %s2087 = vtos %v2086
    %v2088 = vstv %s2087
    %v2089 = vsel %vm46, %v2051, -inf
    %2090 = vmax.xlane.f32.xlu0 %v2089
    %v2091 = vpop.xlane.xlu0 %2090
    %v2092 = vrot.slane %v2091, 4
    %v2093 = vmax.f32 %v2091, %v2092
    %v2094 = vrot.slane %v2093, 2
    %v2095 = vmax.f32 %v2093, %v2094
    %v2096 = vrot.slane %v2095, 1
    %v2097 = vmax.f32 %v2095, %v2096
    %s2098 = vtos %v2097
    %v2099 = vstv %s2098
    %v2100 = vadd.f32 %v2088, %v2099
    %v2101 = vadd.f32 %v2077, %v2100
    %v2102 = vsel %vm46, %v2048, -inf
    %2103 = vmax.xlane.f32.xlu0 %v2102
    %v2104 = vpop.xlane.xlu0 %2103
    %v2105 = vrot.slane %v2104, 4
    %v2106 = vmax.f32 %v2104, %v2105
    %v2107 = vrot.slane %v2106, 2
    %v2108 = vmax.f32 %v2106, %v2107
    %v2109 = vrot.slane %v2108, 1
    %v2110 = vmax.f32 %v2108, %v2109
    %s2111 = vtos %v2110
    %v2112 = vstv %s2111
    %v2113 = vsel %vm46, %v2052, -inf
    %2114 = vmax.xlane.f32.xlu0 %v2113
    %v2115 = vpop.xlane.xlu0 %2114
    %v2116 = vrot.slane %v2115, 4
    %v2117 = vmax.f32 %v2115, %v2116
    %v2118 = vrot.slane %v2117, 2
    %v2119 = vmax.f32 %v2117, %v2118
    %v2120 = vrot.slane %v2119, 1
    %v2121 = vmax.f32 %v2119, %v2120
    %s2122 = vtos %v2121
    %v2123 = vstv %s2122
    %v2124 = vadd.f32 %v2112, %v2123
    %v2125 = vadd.f32 %v2101, %v2124
    %v2126 = vsel %vm46, %v2049, -inf
    %2127 = vmax.xlane.f32.xlu0 %v2126
    %v2128 = vpop.xlane.xlu0 %2127
    %v2129 = vrot.slane %v2128, 4
    %v2130 = vmax.f32 %v2128, %v2129
    %v2131 = vrot.slane %v2130, 2
    %v2132 = vmax.f32 %v2130, %v2131
    %v2133 = vrot.slane %v2132, 1
    %v2134 = vmax.f32 %v2132, %v2133
    %s2135 = vtos %v2134
    %v2136 = vstv %s2135
    %v2137 = vsel %vm46, %v2053, -inf
    %2138 = vmax.xlane.f32.xlu0 %v2137
    %v2139 = vpop.xlane.xlu0 %2138
    %v2140 = vrot.slane %v2139, 4
    %v2141 = vmax.f32 %v2139, %v2140
    %v2142 = vrot.slane %v2141, 2
    %v2143 = vmax.f32 %v2141, %v2142
    %v2144 = vrot.slane %v2143, 1
    %v2145 = vmax.f32 %v2143, %v2144
    %s2146 = vtos %v2145
    %v2147 = vstv %s2146
    %v2148 = vadd.f32 %v2136, %v2147
    %v2149 = vadd.f32 %v2125, %v2148
    %v2150 = vmul.f32 %v24, %v24
    %v2151 = vmul.f32 %v25, %v25
    %v2152 = vmul.f32 %v26, %v26
    %v2153 = vmul.f32 %v27, %v27
    %v2154 = vsel %vm46, %v2150, 0.0
    %v2155 = vsel %vm46, %v2151, 0.0
    %v2156 = vadd.f32 %v2154, %v2155
    %v2157 = vsel %vm46, %v2152, 0.0
    %v2158 = vadd.f32 %v2156, %v2157
    %v2159 = vsel %vm46, %v2153, 0.0
    %v2160 = vadd.f32 %v2158, %v2159
    %2161 = vadd.xlane.f32.xlu0 %v2160
    %v2162 = vpop.xlane.xlu0 %2161
    %v2163 = vrot.slane %v2162, 4
    %v2164 = vadd.f32 %v2162, %v2163
    %v2165 = vrot.slane %v2164, 2
    %v2166 = vadd.f32 %v2164, %v2165
    %v2167 = vrot.slane %v2166, 1
    %v2168 = vadd.f32 %v2166, %v2167
    %s2169 = vtos %v2168
    %v2170 = vstv %s2169
    %v2171 = vmul.f32 %v28, %v28
    %v2172 = vsel %vm383, %v2171, 0.0
    %2173 = vadd.xlane.f32.xlu0 %v2172
    %v2174 = vpop.xlane.xlu0 %2173
    %v2175 = vrot.slane %v2174, 4
    %v2176 = vadd.f32 %v2174, %v2175
    %v2177 = vrot.slane %v2176, 2
    %v2178 = vadd.f32 %v2176, %v2177
    %v2179 = vrot.slane %v2178, 1
    %v2180 = vadd.f32 %v2178, %v2179
    %s2181 = vtos %v2180
    %v2182 = vstv %s2181
    %v2183 = vmul.f32 %v2045, 0.25
    %v2184 = vmul.f32 %v2003, 0.25
    %v2185 = vadd.f32 %v2183, %v2184
    %v2186 = vmul.f32 %v2024, 0.125
    %v2187 = vadd.f32 %v2185, %v2186
    %v2188 = vmul.f32 %v2149, 0.125
    %v2189 = vadd.f32 %v2187, %v2188
    %v2190 = vmul.f32 %v2170, 0.001
    %v2191 = vadd.f32 %v2189, %v2190
    %v2192 = vmul.f32 %v2182, 0.001
    %v2193 = vadd.f32 %v2191, %v2192
    %vm2194 = vcmask 0
    %2195 = vst.msk [vmem:[#allocation2] sm:$0x1] %vm2194, %v2193
    // Predicated region
    $region26: #{tpu_custom_call.1} parent=1 // pred_check
      _
    $region27: #{tpu_custom_call.1} parent=1 // pred_check_branch
      %2197 = sbr.rel (0) target = $region29
    $region28: #{tpu_custom_call.1} parent=1 // pred_region
      %2199 = vsyncadd [#allocation3], 0
      %s2201 = sshll.u32 [#allocation2], 4
      %s2202 = int_to_ptr.vmem [resolvable:$true] %s2201
      %s2203 = sshll.u32 %s6, 4
      %s2204 = int_to_ptr.hbm [resolvable:$true] %s2203
      %2206 = dma.vmem_to_hbm [thread:$0]  %s2202, 16, %s2204, [#allocation3]
    $region29: #{tpu_custom_call.1} parent=1 // pred_fallthru
      _
    // Predicated region
    $region30: #{tpu_custom_call.1} parent=1 // pred_check
      _
    $region31: #{tpu_custom_call.1} parent=1 // pred_check_branch
      %2208 = sbr.rel (0) target = $region33
    $region32: #{tpu_custom_call.1} parent=1 // pred_region
      %2210 = dma.done [#allocation3], 16
    $region33: #{tpu_custom_call.1} parent=1 // pred_fallthru
      _
    %2211 = vsyncpa [#allocation3], 1

</llo_original>
